<compile_context>
chip_gen: v7x
topology: tpu7x:2x2x1
jax: 0.10.0
libtpu: 0.0.40
codegen_flags: <defaults>
</compile_context>

<pallas_src>
import functools

import jax
import jax.numpy as jnp
from jax.experimental import pallas as pl
from jax.experimental.pallas import tpu as pltpu


# ----------------------------------------------------------------------------
# Fused forward kernel: conv stack (Conv1d + ReLU + MaxPool) + fc stack
# ----------------------------------------------------------------------------
def _fused_forward_kernel(*refs, conv_cfg, n_fc):
    n_conv = len(conv_cfg)
    x_ref = refs[0]                                         # (TB, L, C_in)
    conv_w = refs[1:1 + n_conv]                             # (C_in*K, C_out) bf16
    conv_b = refs[1 + n_conv:1 + 2 * n_conv]                # (1, C_out) f32
    fc_w = refs[1 + 2 * n_conv:1 + 2 * n_conv + n_fc]       # (D, F) bf16
    fc_b = refs[1 + 2 * n_conv + n_fc:1 + 2 * n_conv + 2 * n_fc]  # (1, F) f32
    o_ref = refs[-1]                                        # (TB, n_classes)

    act = x_ref[...].astype(jnp.bfloat16)                   # (TB, L, C_in)

    # ---- Conv1d(valid) + ReLU (+ MaxPool1d) layers -------------------------
    for li, (c_out, ksz, pool) in enumerate(conv_cfg):
        tb, l_in, c_in = act.shape
        l_out = l_in - ksz + 1
        # K-unfold: concat the K shifted length-slices along the channel (lane)
        # axis -> one MXU contraction of width C_in*K instead of K small ones.
        x_unf = jnp.concatenate(
            [act[:, kk:kk + l_out, :] for kk in range(ksz)], axis=-1)
        y = jnp.dot(x_unf.reshape(tb * l_out, c_in * ksz), conv_w[li][...],
                    preferred_element_type=jnp.float32)
        y = y.reshape(tb, l_out, c_out) + conv_b[li][...][None]   # bias (f32)
        y = jnp.maximum(y, 0.0)                                   # ReLU
        if pool != -1:
            # MaxPool1d(kernel=stride=pool), floor on length (PyTorch); the
            # reduction runs over the sublane axis.
            l_p = l_out // pool
            y = jnp.max(y[:, :l_p * pool, :].reshape(tb, l_p, pool, c_out),
                        axis=2)
        act = y.astype(jnp.bfloat16)

    # ---- flatten + fc stack (Dropout(0.5) is identity in eval mode) --------
    h = act.reshape(act.shape[0], -1)            # (TB, L_final*C_out) bf16
    for fi in range(n_fc):
        h = jnp.dot(h, fc_w[fi][...],
                    preferred_element_type=jnp.float32) + fc_b[fi][...]
        if fi < n_fc - 1:
            h = jnp.maximum(h, 0.0).astype(jnp.bfloat16)

    o_ref[...] = h.astype(o_ref.dtype)


# ----------------------------------------------------------------------------
# One-time parameter re-layout (do at parameter-load time, NOT per forward)
# ----------------------------------------------------------------------------
def prepare_params(raw_params, conv_cfg, l_final, dtype=jnp.bfloat16):
    """Re-layout PyTorch-convention weights for the fused kernel.

    * conv: (C_out, C_in, K) -> (K*C_in, C_out), row index k*C_in + ci, matching
      the in-kernel K-unfold concat order.
    * fc0: columns permuted from PyTorch's (C, L) flatten order to the kernel's
      (L, C) flatten order, then transposed to (D, F).
    * fc1/fc2: transposed to (D, F).
    Matmul weights cast to bf16; biases stay f32, shaped (1, F).
    """
    conv_w, conv_b = [], []
    for (w, b), (c_out, _k, _p) in zip(raw_params["conv"], conv_cfg):
        conv_w.append(jnp.transpose(w, (2, 1, 0)).reshape(-1, c_out).astype(dtype))
        conv_b.append(b.reshape(1, -1).astype(jnp.float32))

    fc_w, fc_b = [], []
    c_last = conv_cfg[-1][0]
    for i, (w, b) in enumerate(raw_params["fc"]):
        f_out = w.shape[0]
        if i == 0:
            # PyTorch flatten index: co * l_final + l ; kernel flatten: l*C + co.
            w = (w.reshape(f_out, c_last, l_final)
                 .transpose(2, 1, 0).reshape(l_final * c_last, f_out))
        else:
            w = w.T
        fc_w.append(w.astype(dtype))
        fc_b.append(b.reshape(1, -1).astype(jnp.float32))

    return {"conv_w": conv_w, "conv_b": conv_b, "fc_w": fc_w, "fc_b": fc_b}


# ----------------------------------------------------------------------------
# Forward wrapper: one pallas_call for the whole network
# ----------------------------------------------------------------------------
def char_cnn_forward(x, prep, conv_cfg, *, batch_tile=8):
    # x: (B, max_length, n_chars)  — same input layout as the PyTorch forward.
    B, L, C = x.shape
    tb = min(batch_tile, B)
    b_pad = pl.cdiv(B, tb) * tb
    if b_pad != B:
        x = jnp.pad(x, ((0, b_pad - B), (0, 0), (0, 0)))
    x = x.astype(jnp.bfloat16)          # halve HBM->VMEM bytes for the input

    weights = (list(prep["conv_w"]) + list(prep["conv_b"])
               + list(prep["fc_w"]) + list(prep["fc_b"]))
    n_fc = len(prep["fc_w"])
    n_classes = prep["fc_w"][-1].shape[1]

    def full_block(a):
        # Whole-array block, constant over the batch grid -> stays resident.
        return pl.BlockSpec(a.shape, lambda i: (0,) * a.ndim)

    kernel = functools.partial(_fused_forward_kernel,
                               conv_cfg=tuple(conv_cfg), n_fc=n_fc)
    out = pl.pallas_call(
        kernel,
        out_shape=jax.ShapeDtypeStruct((b_pad, n_classes), jnp.float32),
        grid=(b_pad // tb,),
        in_specs=[pl.BlockSpec((tb, L, C), lambda i: (i, 0, 0))]
                 + [full_block(a) for a in weights],
        out_specs=pl.BlockSpec((tb, n_classes), lambda i: (i, 0)),
        compiler_params=pltpu.CompilerParams(
            dimension_semantics=("parallel",),
            vmem_limit_bytes=32 * 1024 * 1024),
    )(x, *weights)
    return out[:B]


# ----------------------------------------------------------------------------
# Pure-JAX reference (mirrors the kernel's bf16-matmul / f32-accumulate scheme)
# ----------------------------------------------------------------------------
def ref_forward(x, raw_params, conv_cfg):
    bf = jnp.bfloat16
    out = jnp.transpose(x, (0, 2, 1))                     # (B, C, L)
    for (w, b), (_c, _k, pool) in zip(raw_params["conv"], conv_cfg):
        out = jax.lax.conv_general_dilated(
            out.astype(bf), w.astype(bf), window_strides=(1,), padding="VALID",
            dimension_numbers=("NCH", "OIH", "NCH"),
            preferred_element_type=jnp.float32)
        out = jnp.maximum(out + b[None, :, None], 0.0)
        if pool != -1:
            B_, C_, L_ = out.shape
            lp = L_ // pool
            out = jnp.max(out[:, :, :lp * pool].reshape(B_, C_, lp, pool), axis=-1)
    out = out.reshape(out.shape[0], -1)
    for i, (w, b) in enumerate(raw_params["fc"]):
        out = jnp.dot(out.astype(bf), w.astype(bf).T,
                      preferred_element_type=jnp.float32) + b
        if i < len(raw_params["fc"]) - 1:
            out = jnp.maximum(out, 0.0)
    return out


# ----------------------------------------------------------------------------
# Deterministic parameter construction (synthetic, "small" model style init)
# ----------------------------------------------------------------------------
def make_params(key, n_chars, conv_cfg, fc_dim, n_classes, flat_dim, std=0.05):
    keys = jax.random.split(key, 16)
    ki = iter(range(16))
    conv_params = []
    in_ch = n_chars
    for (out_ch, ksz, _pool) in conv_cfg:
        w = std * jax.random.normal(keys[next(ki)], (out_ch, in_ch, ksz), jnp.float32)
        bound = 1.0 / jnp.sqrt(in_ch * ksz)
        b = jax.random.uniform(keys[next(ki)], (out_ch,), jnp.float32, -bound, bound)
        conv_params.append((w, b))
        in_ch = out_ch

    fc_params = []
    dims = [(flat_dim, fc_dim), (fc_dim, fc_dim), (fc_dim, n_classes)]
    for (d_in, d_out) in dims:
        w = std * jax.random.normal(keys[next(ki)], (d_out, d_in), jnp.float32)
        bound = 1.0 / jnp.sqrt(d_in)
        b = jax.random.uniform(keys[next(ki)], (d_out,), jnp.float32, -bound, bound)
        fc_params.append((w, b))

    return {"conv": conv_params, "fc": fc_params}


if __name__ == "__main__":
    # Small synthetic configuration consistent with the module:
    #   conv config entries are [out_channels, kernel_size, pool] as in the JSON.
    batch_size = 2
    n_chars = 16          # number_of_characters + len(extra_characters)
    max_length = 32
    n_classes = 4
    fc_dim = 64
    conv_cfg = [(32, 3, 2),    # Conv1d(16->32, k=3) + ReLU + MaxPool1d(2)
                (32, 3, -1)]   # Conv1d(32->32, k=3) + ReLU

    # Trace the conv stack shapes to get the flatten dimension (_get_conv_output).
    L = max_length
    for (_out_ch, ksz, pool) in conv_cfg:
        L = L - ksz + 1
        if pool != -1:
            L = L // pool
    l_final = L
    flat_dim = conv_cfg[-1][0] * l_final   # 32 * 13 = 416

    key = jax.random.PRNGKey(0)
    k_x, k_p = jax.random.split(key)
    x = jax.random.uniform(k_x, (batch_size, max_length, n_chars), jnp.float32)
    raw_params = make_params(k_p, n_chars, conv_cfg, fc_dim, n_classes, flat_dim)
    prep = prepare_params(raw_params, conv_cfg, l_final)   # one-time re-layout

    out = jax.block_until_ready(char_cnn_forward(x, prep, conv_cfg))
    ref = jax.block_until_ready(ref_forward(x, raw_params, conv_cfg))

    assert out.shape == (batch_size, n_classes), out.shape
    assert jnp.allclose(out, ref, atol=1e-3, rtol=1e-3), (out, ref)
    print("KERNEL_OK")
</pallas_src>

<mosaic_0001>
module attributes {stable_mosaic.version = 11 : i64} {
  func.func @_fused_forward_kernel(%arg0: i32, %arg1: memref<2x32x16xbf16, #tpu.memory_space<vmem>>, %arg2: memref<48x32xbf16, #tpu.memory_space<vmem>>, %arg3: memref<96x32xbf16, #tpu.memory_space<vmem>>, %arg4: memref<1x32xf32, #tpu.memory_space<vmem>>, %arg5: memref<1x32xf32, #tpu.memory_space<vmem>>, %arg6: memref<416x64xbf16, #tpu.memory_space<vmem>>, %arg7: memref<64x64xbf16, #tpu.memory_space<vmem>>, %arg8: memref<64x4xbf16, #tpu.memory_space<vmem>>, %arg9: memref<1x64xf32, #tpu.memory_space<vmem>>, %arg10: memref<1x64xf32, #tpu.memory_space<vmem>>, %arg11: memref<1x4xf32, #tpu.memory_space<vmem>>, %arg12: memref<2x4xf32, #tpu.memory_space<vmem>>) attributes {dimension_semantics = [#tpu.dimension_semantics<parallel>], iteration_bounds = array<i64: 1>, scalar_prefetch = 0 : i64, scratch_operands = 0 : i64, tpu.core_type = #tpu.core_type<tc>, window_params = [{transform_indices = @transform_0, window_bounds = array<i64: 2, 32, 16>}, {pipeline_mode = #tpu.pipeline_mode<synchronous>, transform_indices = @transform_1, window_bounds = array<i64: 48, 32>}, {pipeline_mode = #tpu.pipeline_mode<synchronous>, transform_indices = @transform_2, window_bounds = array<i64: 96, 32>}, {pipeline_mode = #tpu.pipeline_mode<synchronous>, transform_indices = @transform_3, window_bounds = array<i64: 1, 32>}, {pipeline_mode = #tpu.pipeline_mode<synchronous>, transform_indices = @transform_4, window_bounds = array<i64: 1, 32>}, {pipeline_mode = #tpu.pipeline_mode<synchronous>, transform_indices = @transform_5, window_bounds = array<i64: 416, 64>}, {pipeline_mode = #tpu.pipeline_mode<synchronous>, transform_indices = @transform_6, window_bounds = array<i64: 64, 64>}, {pipeline_mode = #tpu.pipeline_mode<synchronous>, transform_indices = @transform_7, window_bounds = array<i64: 64, 4>}, {pipeline_mode = #tpu.pipeline_mode<synchronous>, transform_indices = @transform_8, window_bounds = array<i64: 1, 64>}, {pipeline_mode = #tpu.pipeline_mode<synchronous>, transform_indices = @transform_9, window_bounds = array<i64: 1, 64>}, {pipeline_mode = #tpu.pipeline_mode<synchronous>, transform_indices = @transform_10, window_bounds = array<i64: 1, 4>}, {transform_indices = @transform_11, window_bounds = array<i64: 2, 4>}]} {
    %c0 = arith.constant 0 : index
    %c0_0 = arith.constant 0 : index
    %c0_1 = arith.constant 0 : index
    %0 = vector.load %arg1[%c0, %c0_0, %c0_1] : memref<2x32x16xbf16, #tpu.memory_space<vmem>>, vector<2x32x16xbf16>
    %1 = vector.extract_strided_slice %0 {offsets = [0, 0, 0], sizes = [2, 30, 16], strides = [1, 1, 1]} : vector<2x32x16xbf16> to vector<2x30x16xbf16>
    %2 = vector.extract_strided_slice %0 {offsets = [0, 1, 0], sizes = [2, 30, 16], strides = [1, 1, 1]} : vector<2x32x16xbf16> to vector<2x30x16xbf16>
    %3 = vector.extract_strided_slice %0 {offsets = [0, 2, 0], sizes = [2, 30, 16], strides = [1, 1, 1]} : vector<2x32x16xbf16> to vector<2x30x16xbf16>
    %4 = tpu.concatenate %1, %2, %3 in 2 : vector<2x30x16xbf16>, vector<2x30x16xbf16>, vector<2x30x16xbf16> -> vector<2x30x48xbf16>
    %5 = vector.shape_cast %4 : vector<2x30x48xbf16> to vector<60x48xbf16>
    %c0_2 = arith.constant 0 : index
    %c0_3 = arith.constant 0 : index
    %6 = vector.load %arg2[%c0_2, %c0_3] : memref<48x32xbf16, #tpu.memory_space<vmem>>, vector<48x32xbf16>
    %cst = arith.constant dense<0.000000e+00> : vector<60x32xf32>
    %7 = tpu.matmul %5, %6, %cst {dimension_numbers = #tpu.dot_dimension_numbers<[1], [0], [0], [1], [0, 0, 1, 1], [], []>} : vector<60x48xbf16>, vector<48x32xbf16>, vector<60x32xf32> -> vector<60x32xf32>
    %8 = vector.shape_cast %7 : vector<60x32xf32> to vector<2x30x32xf32>
    %c0_4 = arith.constant 0 : index
    %c0_5 = arith.constant 0 : index
    %9 = vector.load %arg4[%c0_4, %c0_5] : memref<1x32xf32, #tpu.memory_space<vmem>>, vector<1x32xf32>
    %10 = vector.shape_cast %9 : vector<1x32xf32> to vector<1x1x32xf32>
    %11 = vector.broadcast %10 : vector<1x1x32xf32> to vector<2x30x32xf32>
    %12 = arith.addf %8, %11 : vector<2x30x32xf32>
    %cst_6 = arith.constant 0.000000e+00 : f32
    %13 = vector.broadcast %cst_6 : f32 to vector<2x30x32xf32>
    %14 = arith.maximumf %12, %13 : vector<2x30x32xf32>
    %15 = vector.shape_cast %14 : vector<2x30x32xf32> to vector<2x15x2x32xf32>
    %cst_7 = arith.constant dense<0xFF800000> : vector<2x15x32xf32>
    %16 = vector.multi_reduction <maximumf>, %15, %cst_7 [2] : vector<2x15x2x32xf32> to vector<2x15x32xf32>
    %17 = arith.truncf %16 : vector<2x15x32xf32> to vector<2x15x32xbf16>
    %18 = vector.extract_strided_slice %17 {offsets = [0, 0, 0], sizes = [2, 13, 32], strides = [1, 1, 1]} : vector<2x15x32xbf16> to vector<2x13x32xbf16>
    %19 = vector.extract_strided_slice %17 {offsets = [0, 1, 0], sizes = [2, 13, 32], strides = [1, 1, 1]} : vector<2x15x32xbf16> to vector<2x13x32xbf16>
    %20 = vector.extract_strided_slice %17 {offsets = [0, 2, 0], sizes = [2, 13, 32], strides = [1, 1, 1]} : vector<2x15x32xbf16> to vector<2x13x32xbf16>
    %21 = tpu.concatenate %18, %19, %20 in 2 : vector<2x13x32xbf16>, vector<2x13x32xbf16>, vector<2x13x32xbf16> -> vector<2x13x96xbf16>
    %22 = vector.shape_cast %21 : vector<2x13x96xbf16> to vector<26x96xbf16>
    %c0_8 = arith.constant 0 : index
    %c0_9 = arith.constant 0 : index
    %23 = vector.load %arg3[%c0_8, %c0_9] : memref<96x32xbf16, #tpu.memory_space<vmem>>, vector<96x32xbf16>
    %cst_10 = arith.constant dense<0.000000e+00> : vector<26x32xf32>
    %24 = tpu.matmul %22, %23, %cst_10 {dimension_numbers = #tpu.dot_dimension_numbers<[1], [0], [0], [1], [0, 0, 1, 1], [], []>} : vector<26x96xbf16>, vector<96x32xbf16>, vector<26x32xf32> -> vector<26x32xf32>
    %25 = vector.shape_cast %24 : vector<26x32xf32> to vector<2x13x32xf32>
    %c0_11 = arith.constant 0 : index
    %c0_12 = arith.constant 0 : index
    %26 = vector.load %arg5[%c0_11, %c0_12] : memref<1x32xf32, #tpu.memory_space<vmem>>, vector<1x32xf32>
    %27 = vector.shape_cast %26 : vector<1x32xf32> to vector<1x1x32xf32>
    %28 = vector.broadcast %27 : vector<1x1x32xf32> to vector<2x13x32xf32>
    %29 = arith.addf %25, %28 : vector<2x13x32xf32>
    %cst_13 = arith.constant 0.000000e+00 : f32
    %30 = vector.broadcast %cst_13 : f32 to vector<2x13x32xf32>
    %31 = arith.maximumf %29, %30 : vector<2x13x32xf32>
    %32 = arith.truncf %31 : vector<2x13x32xf32> to vector<2x13x32xbf16>
    %33 = vector.shape_cast %32 : vector<2x13x32xbf16> to vector<2x416xbf16>
    %c0_14 = arith.constant 0 : index
    %c0_15 = arith.constant 0 : index
    %34 = vector.load %arg6[%c0_14, %c0_15] : memref<416x64xbf16, #tpu.memory_space<vmem>>, vector<416x64xbf16>
    %cst_16 = arith.constant dense<0.000000e+00> : vector<2x64xf32>
    %35 = tpu.matmul %33, %34, %cst_16 {dimension_numbers = #tpu.dot_dimension_numbers<[1], [0], [0], [1], [0, 0, 1, 1], [], []>} : vector<2x416xbf16>, vector<416x64xbf16>, vector<2x64xf32> -> vector<2x64xf32>
    %c0_17 = arith.constant 0 : index
    %c0_18 = arith.constant 0 : index
    %36 = vector.load %arg9[%c0_17, %c0_18] : memref<1x64xf32, #tpu.memory_space<vmem>>, vector<1x64xf32>
    %37 = vector.broadcast %36 : vector<1x64xf32> to vector<2x64xf32>
    %38 = arith.addf %35, %37 : vector<2x64xf32>
    %cst_19 = arith.constant 0.000000e+00 : f32
    %39 = vector.broadcast %cst_19 : f32 to vector<2x64xf32>
    %40 = arith.maximumf %38, %39 : vector<2x64xf32>
    %41 = arith.truncf %40 : vector<2x64xf32> to vector<2x64xbf16>
    %c0_20 = arith.constant 0 : index
    %c0_21 = arith.constant 0 : index
    %42 = vector.load %arg7[%c0_20, %c0_21] : memref<64x64xbf16, #tpu.memory_space<vmem>>, vector<64x64xbf16>
    %cst_22 = arith.constant dense<0.000000e+00> : vector<2x64xf32>
    %43 = tpu.matmul %41, %42, %cst_22 {dimension_numbers = #tpu.dot_dimension_numbers<[1], [0], [0], [1], [0, 0, 1, 1], [], []>} : vector<2x64xbf16>, vector<64x64xbf16>, vector<2x64xf32> -> vector<2x64xf32>
    %c0_23 = arith.constant 0 : index
    %c0_24 = arith.constant 0 : index
    %44 = vector.load %arg10[%c0_23, %c0_24] : memref<1x64xf32, #tpu.memory_space<vmem>>, vector<1x64xf32>
    %45 = vector.broadcast %44 : vector<1x64xf32> to vector<2x64xf32>
    %46 = arith.addf %43, %45 : vector<2x64xf32>
    %cst_25 = arith.constant 0.000000e+00 : f32
    %47 = vector.broadcast %cst_25 : f32 to vector<2x64xf32>
    %48 = arith.maximumf %46, %47 : vector<2x64xf32>
    %49 = arith.truncf %48 : vector<2x64xf32> to vector<2x64xbf16>
    %c0_26 = arith.constant 0 : index
    %c0_27 = arith.constant 0 : index
    %50 = vector.load %arg8[%c0_26, %c0_27] : memref<64x4xbf16, #tpu.memory_space<vmem>>, vector<64x4xbf16>
    %cst_28 = arith.constant dense<0.000000e+00> : vector<2x4xf32>
    %51 = tpu.matmul %49, %50, %cst_28 {dimension_numbers = #tpu.dot_dimension_numbers<[1], [0], [0], [1], [0, 0, 1, 1], [], []>} : vector<2x64xbf16>, vector<64x4xbf16>, vector<2x4xf32> -> vector<2x4xf32>
    %c0_29 = arith.constant 0 : index
    %c0_30 = arith.constant 0 : index
    %52 = vector.load %arg11[%c0_29, %c0_30] : memref<1x4xf32, #tpu.memory_space<vmem>>, vector<1x4xf32>
    %53 = vector.broadcast %52 : vector<1x4xf32> to vector<2x4xf32>
    %54 = arith.addf %51, %53 : vector<2x4xf32>
    %c0_31 = arith.constant 0 : index
    %c0_32 = arith.constant 0 : index
    %55 = vector.load %arg12[%c0_31, %c0_32] : memref<2x4xf32, #tpu.memory_space<vmem>>, vector<2x4xf32>
    tpu.vector_store %arg12[%c0_31, %c0_32], %54 {strides = array<i32>} : memref<2x4xf32, #tpu.memory_space<vmem>>, vector<2x4xf32>,
    return
  }
  func.func @transform_0(%arg0: i32) -> (i32, i32, i32) {
    %c0_i32 = arith.constant 0 : i32
    %c0_i32_0 = arith.constant 0 : i32
    %c0_i32_1 = arith.constant 0 : i32
    return %arg0, %c0_i32, %c0_i32_0 : i32, i32, i32
  }
  func.func @transform_1(%arg0: i32) -> (i32, i32) {
    %c0_i32 = arith.constant 0 : i32
    %c0_i32_0 = arith.constant 0 : i32
    %c0_i32_1 = arith.constant 0 : i32
    return %c0_i32, %c0_i32_0 : i32, i32
  }
  func.func @transform_2(%arg0: i32) -> (i32, i32) {
    %c0_i32 = arith.constant 0 : i32
    %c0_i32_0 = arith.constant 0 : i32
    %c0_i32_1 = arith.constant 0 : i32
    return %c0_i32, %c0_i32_0 : i32, i32
  }
  func.func @transform_3(%arg0: i32) -> (i32, i32) {
    %c0_i32 = arith.constant 0 : i32
    %c0_i32_0 = arith.constant 0 : i32
    %c0_i32_1 = arith.constant 0 : i32
    return %c0_i32, %c0_i32_0 : i32, i32
  }
  func.func @transform_4(%arg0: i32) -> (i32, i32) {
    %c0_i32 = arith.constant 0 : i32
    %c0_i32_0 = arith.constant 0 : i32
    %c0_i32_1 = arith.constant 0 : i32
    return %c0_i32, %c0_i32_0 : i32, i32
  }
  func.func @transform_5(%arg0: i32) -> (i32, i32) {
    %c0_i32 = arith.constant 0 : i32
    %c0_i32_0 = arith.constant 0 : i32
    %c0_i32_1 = arith.constant 0 : i32
    return %c0_i32, %c0_i32_0 : i32, i32
  }
  func.func @transform_6(%arg0: i32) -> (i32, i32) {
    %c0_i32 = arith.constant 0 : i32
    %c0_i32_0 = arith.constant 0 : i32
    %c0_i32_1 = arith.constant 0 : i32
    return %c0_i32, %c0_i32_0 : i32, i32
  }
  func.func @transform_7(%arg0: i32) -> (i32, i32) {
    %c0_i32 = arith.constant 0 : i32
    %c0_i32_0 = arith.constant 0 : i32
    %c0_i32_1 = arith.constant 0 : i32
    return %c0_i32, %c0_i32_0 : i32, i32
  }
  func.func @transform_8(%arg0: i32) -> (i32, i32) {
    %c0_i32 = arith.constant 0 : i32
    %c0_i32_0 = arith.constant 0 : i32
    %c0_i32_1 = arith.constant 0 : i32
    return %c0_i32, %c0_i32_0 : i32, i32
  }
  func.func @transform_9(%arg0: i32) -> (i32, i32) {
    %c0_i32 = arith.constant 0 : i32
    %c0_i32_0 = arith.constant 0 : i32
    %c0_i32_1 = arith.constant 0 : i32
    return %c0_i32, %c0_i32_0 : i32, i32
  }
  func.func @transform_10(%arg0: i32) -> (i32, i32) {
    %c0_i32 = arith.constant 0 : i32
    %c0_i32_0 = arith.constant 0 : i32
    %c0_i32_1 = arith.constant 0 : i32
    return %c0_i32, %c0_i32_0 : i32, i32
  }
  func.func @transform_11(%arg0: i32) -> (i32, i32) {
    %c0_i32 = arith.constant 0 : i32
    %c0_i32_0 = arith.constant 0 : i32
    return %arg0, %c0_i32 : i32, i32
  }
}

</mosaic_0001>

<llo_original>
// kernel: tpu_custom_call.1
$region0: #{tpu_custom_call.1}
  #allocation0 [shape = 'u32[]', space=smem, size = 0x4, offset = 0x4, fixed_abs, tag = 'smem constant byte address 0x4 - core index']
  #allocation1 [shape = 'u32[144,128]{1,0:T(1,128)}', space=vmem, size = 0x12000, scoped, tag = 'internal scratch']
  %s0 = inlined_call_operand.vmem [shape: bf16[2,32,16], index: 0, kind: input, shape index: {}]
  %s1 = inlined_call_operand.vmem [shape: bf16[48,32], index: 1, kind: input, shape index: {}]
  %s2 = inlined_call_operand.vmem [shape: bf16[96,32], index: 2, kind: input, shape index: {}]
  %s3 = inlined_call_operand.vmem [shape: f32[1,32], index: 3, kind: input, shape index: {}]
  %s4 = inlined_call_operand.vmem [shape: f32[1,32], index: 4, kind: input, shape index: {}]
  %s5 = inlined_call_operand.vmem [shape: bf16[416,64], index: 5, kind: input, shape index: {}]
  %s6 = inlined_call_operand.vmem [shape: bf16[64,64], index: 6, kind: input, shape index: {}]
  %s7 = inlined_call_operand.vmem [shape: bf16[64,4], index: 7, kind: input, shape index: {}]
  %s8 = inlined_call_operand.vmem [shape: f32[1,64], index: 8, kind: input, shape index: {}]
  %s9 = inlined_call_operand.vmem [shape: f32[1,64], index: 9, kind: input, shape index: {}]
  %s10 = inlined_call_operand.vmem [shape: f32[1,4], index: 10, kind: input, shape index: {}]
  %s11 = inlined_call_operand.hbm [shape: f32[2,4], index: 11, kind: output, shape index: {}]
  %s12 = sld [smem:[#allocation0]]
  $region54: #{tpu_custom_call.1} parent=0
    _
  %s14 = ssub.s32 1, %s12
  %s15 = scalar_select 0, %s14, %s12
  $region1: #{tpu_custom_call.1} parent=0
    #allocation2 [shape = 'u8[1024]{0}', space=vmem, size = 0x400, scoped, tag = 'output window, operand 0, single buffered']
    #allocation3 [shape = 's32[1]{0}', space=sflag, size = 0x4, scoped, tag = 'scoped memory for tpu_custom_call.1']
    %16 = vsyncpa [#allocation3], 0
    // Predicated region
    $region2: #{tpu_custom_call.1} parent=1 // pred_check
      _
    $region3: #{tpu_custom_call.1} parent=1 // pred_check_branch
      %18 = sbr.rel (0) target = $region5
    $region4: #{tpu_custom_call.1} parent=1 // pred_region
      _
    $region5: #{tpu_custom_call.1} parent=1 // pred_fallthru
      _
    // Predicated region
    $region6: #{tpu_custom_call.1} parent=1 // pred_check
      _
    $region7: #{tpu_custom_call.1} parent=1 // pred_check_branch
      %20 = sbr.rel (0) target = $region9
    $region8: #{tpu_custom_call.1} parent=1 // pred_region
      _
    $region9: #{tpu_custom_call.1} parent=1 // pred_fallthru
      _
    // Predicated region
    $region10: #{tpu_custom_call.1} parent=1 // pred_check
      _
    $region11: #{tpu_custom_call.1} parent=1 // pred_check_branch
      %22 = sbr.rel (0) target = $region13
    $region12: #{tpu_custom_call.1} parent=1 // pred_region
      _
    $region13: #{tpu_custom_call.1} parent=1 // pred_fallthru
      _
    // Predicated region
    $region14: #{tpu_custom_call.1} parent=1 // pred_check
      _
    $region15: #{tpu_custom_call.1} parent=1 // pred_check_branch
      %24 = sbr.rel (0) target = $region17
    $region16: #{tpu_custom_call.1} parent=1 // pred_region
      _
    $region17: #{tpu_custom_call.1} parent=1 // pred_fallthru
      _
    // Predicated region
    $region18: #{tpu_custom_call.1} parent=1 // pred_check
      _
    $region19: #{tpu_custom_call.1} parent=1 // pred_check_branch
      %26 = sbr.rel (0) target = $region21
    $region20: #{tpu_custom_call.1} parent=1 // pred_region
      _
    $region21: #{tpu_custom_call.1} parent=1 // pred_fallthru
      _
    // Predicated region
    $region22: #{tpu_custom_call.1} parent=1 // pred_check
      _
    $region23: #{tpu_custom_call.1} parent=1 // pred_check_branch
      %28 = sbr.rel (0) target = $region25
    $region24: #{tpu_custom_call.1} parent=1 // pred_region
      _
    $region25: #{tpu_custom_call.1} parent=1 // pred_fallthru
      _
    // Predicated region
    $region26: #{tpu_custom_call.1} parent=1 // pred_check
      _
    $region27: #{tpu_custom_call.1} parent=1 // pred_check_branch
      %30 = sbr.rel (0) target = $region29
    $region28: #{tpu_custom_call.1} parent=1 // pred_region
      _
    $region29: #{tpu_custom_call.1} parent=1 // pred_fallthru
      _
    // Predicated region
    $region30: #{tpu_custom_call.1} parent=1 // pred_check
      _
    $region31: #{tpu_custom_call.1} parent=1 // pred_check_branch
      %32 = sbr.rel (0) target = $region33
    $region32: #{tpu_custom_call.1} parent=1 // pred_region
      _
    $region33: #{tpu_custom_call.1} parent=1 // pred_fallthru
      _
    // Predicated region
    $region34: #{tpu_custom_call.1} parent=1 // pred_check
      _
    $region35: #{tpu_custom_call.1} parent=1 // pred_check_branch
      %34 = sbr.rel (0) target = $region37
    $region36: #{tpu_custom_call.1} parent=1 // pred_region
      _
    $region37: #{tpu_custom_call.1} parent=1 // pred_fallthru
      _
    // Predicated region
    $region38: #{tpu_custom_call.1} parent=1 // pred_check
      _
    $region39: #{tpu_custom_call.1} parent=1 // pred_check_branch
      %36 = sbr.rel (0) target = $region41
    $region40: #{tpu_custom_call.1} parent=1 // pred_region
      _
    $region41: #{tpu_custom_call.1} parent=1 // pred_fallthru
      _
    // Predicated region
    $region42: #{tpu_custom_call.1} parent=1 // pred_check
      _
    $region43: #{tpu_custom_call.1} parent=1 // pred_check_branch
      %38 = sbr.rel (0) target = $region45
    $region44: #{tpu_custom_call.1} parent=1 // pred_region
      _
    $region45: #{tpu_custom_call.1} parent=1 // pred_fallthru
      _
    %v40 = vld [vmem:[%s0] sm:$0xf]
    %v41 = vld [vmem:[%s0 + $0x4] sm:$0xf]
    %v42 = vld [vmem:[%s0 + $0x8] sm:$0xf]
    %v43 = vld [vmem:[%s0 + $0xc] sm:$0xf]
    %v44 = vld [vmem:[%s0 + $0x10] sm:$0xf]
    %v45 = vld [vmem:[%s0 + $0x14] sm:$0xf]
    %v46 = vld [vmem:[%s0 + $0x18] sm:$0xf]
    %v47 = vld [vmem:[%s0 + $0x1c] sm:$0xf]
    %v56 = vunpack.c.l.b16 %v40
    %v57 = vunpack.c.l.b16 %v41
    %v58 = vunpack.c.l.b16 %v42
    %v59 = vunpack.c.l.b16 %v43
    %v60 = vunpack.c.l.b16 %v44
    %v61 = vunpack.c.l.b16 %v45
    %v62 = vunpack.c.l.b16 %v46
    %v63 = vunpack.c.l.b16 %v47
    %v64 = vpack.c.b16 %v57, %v56
    %v65 = vpack.c.b16 %v59, %v58
    %v66 = vpack.c.b16 %v61, %v60
    %v67 = vpack.c.b16 %v63, %v62
    %vm68 = vsmask.f32 7424
    %v70 = vshrl.u32 %v64, 16
    %v72 = vshll.u32 %v64, 16
    %v74 = vrot.slane %v72, 1
    %v75 = vor.u32 %v70, %v74
    %v77 = vshll.u32 %v65, 16
    %v79 = vrot.slane %v77, 1
    %v80 = vsel %vm68, %v75, %v79
    %v81 = vshrl.u32 %v65, 16
    %v83 = vor.u32 %v81, %v79
    %v85 = vshrl.u32 %v66, 16
    %v87 = vshll.u32 %v66, 16
    %v89 = vrot.slane %v87, 1
    %v90 = vor.u32 %v85, %v89
    %v92 = vshll.u32 %v67, 16
    %v94 = vrot.slane %v92, 1
    %v95 = vsel %vm68, %v90, %v94
    %v96 = vshrl.u32 %v67, 16
    %v98 = vor.u32 %v96, %v94
    %99 = vrot.lane.b32.xlu0 %v80, 16
    %v100 = vpop.permute.xlu0 %99
    %101 = vrot.lane.b32.xlu0 %v83, 16
    %v102 = vpop.permute.xlu0 %101
    %103 = vrot.lane.b32.xlu0 %v95, 16
    %v104 = vpop.permute.xlu0 %103
    %105 = vrot.lane.b32.xlu0 %v98, 16
    %v106 = vpop.permute.xlu0 %105
    %vm107 = vcmask 1046528
    %v108 = vrot.slane %v64, 1
    %v109 = vrot.slane %v65, 1
    %v110 = vsel %vm107, %v108, %v109
    %v111 = vrot.slane %v66, 1
    %v112 = vrot.slane %v67, 1
    %v113 = vsel %vm107, %v111, %v112
    %114 = vrot.lane.b32.xlu0 %v110, 32
    %v115 = vpop.permute.xlu0 %114
    %116 = vrot.lane.b32.xlu0 %v109, 32
    %v117 = vpop.permute.xlu0 %116
    %118 = vrot.lane.b32.xlu0 %v113, 32
    %v119 = vpop.permute.xlu0 %118
    %120 = vrot.lane.b32.xlu0 %v112, 32
    %v121 = vpop.permute.xlu0 %120
    %vm122 = vcmask 130048
    %v124 = vsel %vm122, %v64, %v100
    %v126 = vsel %vm122, %v65, %v102
    %v128 = vsel %vm122, %v66, %v104
    %v130 = vsel %vm122, %v67, %v106
    %vm131 = vcmask 261120
    %v133 = vsel %vm131, %v124, %v115
    %v135 = vsel %vm131, %v126, %v117
    %v137 = vsel %vm131, %v128, %v119
    %v139 = vsel %vm131, %v130, %v121
    %v144 = vcombine.high %v133, %v133
    %v146 = vunpack.c.l.s4 1966171168
    %v147 = vunpack.c.0.s8 %v146
    %v148 = vlaneseq
    %v149 = vshrl.u32 %v148, 7
    %v150 = vsub.s32 %v147, %v149
    %v151 = vrot.slane %v133, %v150
    %v153 = vunpack.c.l.s4 1966171168
    %v154 = vunpack.c.0.s8 %v153
    %v155 = vlaneseq
    %v156 = vshrl.u32 %v155, 7
    %v157 = vsub.s32 %v154, %v156
    %v158 = vrot.slane %v144, %v157
    %v159 = vcombine.high %v151, %v151
    %v160 = vcombine.high %v158, %v158
    %v162 = vunpack.c.l.s4 1966171168
    %v163 = vunpack.c.0.s8 %v162
    %v164 = vlaneseq
    %v165 = vshrl.u32 %v164, 7
    %v166 = vsub.s32 %v163, %v165
    %v167 = vrot.slane %v151, %v166
    %v169 = vunpack.c.l.s4 1966171168
    %v170 = vunpack.c.0.s8 %v169
    %v171 = vlaneseq
    %v172 = vshrl.u32 %v171, 7
    %v173 = vsub.s32 %v170, %v172
    %v174 = vrot.slane %v158, %v173
    %v176 = vunpack.c.l.s4 1966171168
    %v177 = vunpack.c.0.s8 %v176
    %v178 = vlaneseq
    %v179 = vshrl.u32 %v178, 7
    %v180 = vsub.s32 %v177, %v179
    %v181 = vrot.slane %v159, %v180
    %v183 = vunpack.c.l.s4 1966171168
    %v184 = vunpack.c.0.s8 %v183
    %v185 = vlaneseq
    %v186 = vshrl.u32 %v185, 7
    %v187 = vsub.s32 %v184, %v186
    %v188 = vrot.slane %v160, %v187
    %v189 = vcombine.high %v167, %v167
    %v190 = vcombine.high %v174, %v174
    %v191 = vcombine.high %v181, %v181
    %v192 = vcombine.high %v188, %v188
    %v193 = vcombine.high %v135, %v135
    %v195 = vunpack.c.l.s4 1966171168
    %v196 = vunpack.c.0.s8 %v195
    %v197 = vlaneseq
    %v198 = vshrl.u32 %v197, 7
    %v199 = vsub.s32 %v196, %v198
    %v200 = vrot.slane %v135, %v199
    %v202 = vunpack.c.l.s4 1966171168
    %v203 = vunpack.c.0.s8 %v202
    %v204 = vlaneseq
    %v205 = vshrl.u32 %v204, 7
    %v206 = vsub.s32 %v203, %v205
    %v207 = vrot.slane %v193, %v206
    %v208 = vcombine.high %v200, %v200
    %v209 = vcombine.high %v207, %v207
    %v211 = vunpack.c.l.s4 1966171168
    %v212 = vunpack.c.0.s8 %v211
    %v213 = vlaneseq
    %v214 = vshrl.u32 %v213, 7
    %v215 = vsub.s32 %v212, %v214
    %v216 = vrot.slane %v200, %v215
    %v218 = vunpack.c.l.s4 1966171168
    %v219 = vunpack.c.0.s8 %v218
    %v220 = vlaneseq
    %v221 = vshrl.u32 %v220, 7
    %v222 = vsub.s32 %v219, %v221
    %v223 = vrot.slane %v207, %v222
    %v225 = vunpack.c.l.s4 1966171168
    %v226 = vunpack.c.0.s8 %v225
    %v227 = vlaneseq
    %v228 = vshrl.u32 %v227, 7
    %v229 = vsub.s32 %v226, %v228
    %v230 = vrot.slane %v208, %v229
    %v232 = vunpack.c.l.s4 1966171168
    %v233 = vunpack.c.0.s8 %v232
    %v234 = vlaneseq
    %v235 = vshrl.u32 %v234, 7
    %v236 = vsub.s32 %v233, %v235
    %v237 = vrot.slane %v209, %v236
    %v238 = vcombine.high %v216, %v216
    %v239 = vcombine.high %v223, %v223
    %v240 = vcombine.high %v230, %v230
    %v241 = vcombine.high %v137, %v137
    %v243 = vunpack.c.l.s4 1966171168
    %v244 = vunpack.c.0.s8 %v243
    %v245 = vlaneseq
    %v246 = vshrl.u32 %v245, 7
    %v247 = vsub.s32 %v244, %v246
    %v248 = vrot.slane %v137, %v247
    %v250 = vunpack.c.l.s4 1966171168
    %v251 = vunpack.c.0.s8 %v250
    %v252 = vlaneseq
    %v253 = vshrl.u32 %v252, 7
    %v254 = vsub.s32 %v251, %v253
    %v255 = vrot.slane %v241, %v254
    %v256 = vcombine.high %v248, %v248
    %v257 = vcombine.high %v255, %v255
    %v259 = vunpack.c.l.s4 1966171168
    %v260 = vunpack.c.0.s8 %v259
    %v261 = vlaneseq
    %v262 = vshrl.u32 %v261, 7
    %v263 = vsub.s32 %v260, %v262
    %v264 = vrot.slane %v248, %v263
    %v266 = vunpack.c.l.s4 1966171168
    %v267 = vunpack.c.0.s8 %v266
    %v268 = vlaneseq
    %v269 = vshrl.u32 %v268, 7
    %v270 = vsub.s32 %v267, %v269
    %v271 = vrot.slane %v255, %v270
    %v273 = vunpack.c.l.s4 1966171168
    %v274 = vunpack.c.0.s8 %v273
    %v275 = vlaneseq
    %v276 = vshrl.u32 %v275, 7
    %v277 = vsub.s32 %v274, %v276
    %v278 = vrot.slane %v256, %v277
    %v280 = vunpack.c.l.s4 1966171168
    %v281 = vunpack.c.0.s8 %v280
    %v282 = vlaneseq
    %v283 = vshrl.u32 %v282, 7
    %v284 = vsub.s32 %v281, %v283
    %v285 = vrot.slane %v257, %v284
    %v286 = vcombine.high %v264, %v264
    %v287 = vcombine.high %v271, %v271
    %v288 = vcombine.high %v278, %v278
    %v289 = vcombine.high %v285, %v285
    %v290 = vcombine.high %v139, %v139
    %v292 = vunpack.c.l.s4 1966171168
    %v293 = vunpack.c.0.s8 %v292
    %v294 = vlaneseq
    %v295 = vshrl.u32 %v294, 7
    %v296 = vsub.s32 %v293, %v295
    %v297 = vrot.slane %v139, %v296
    %v299 = vunpack.c.l.s4 1966171168
    %v300 = vunpack.c.0.s8 %v299
    %v301 = vlaneseq
    %v302 = vshrl.u32 %v301, 7
    %v303 = vsub.s32 %v300, %v302
    %v304 = vrot.slane %v290, %v303
    %v305 = vcombine.high %v297, %v297
    %v306 = vcombine.high %v304, %v304
    %v308 = vunpack.c.l.s4 1966171168
    %v309 = vunpack.c.0.s8 %v308
    %v310 = vlaneseq
    %v311 = vshrl.u32 %v310, 7
    %v312 = vsub.s32 %v309, %v311
    %v313 = vrot.slane %v297, %v312
    %v315 = vunpack.c.l.s4 1966171168
    %v316 = vunpack.c.0.s8 %v315
    %v317 = vlaneseq
    %v318 = vshrl.u32 %v317, 7
    %v319 = vsub.s32 %v316, %v318
    %v320 = vrot.slane %v304, %v319
    %v322 = vunpack.c.l.s4 1966171168
    %v323 = vunpack.c.0.s8 %v322
    %v324 = vlaneseq
    %v325 = vshrl.u32 %v324, 7
    %v326 = vsub.s32 %v323, %v325
    %v327 = vrot.slane %v305, %v326
    %v329 = vunpack.c.l.s4 1966171168
    %v330 = vunpack.c.0.s8 %v329
    %v331 = vlaneseq
    %v332 = vshrl.u32 %v331, 7
    %v333 = vsub.s32 %v330, %v332
    %v334 = vrot.slane %v306, %v333
    %v335 = vcombine.high %v313, %v313
    %v336 = vcombine.high %v320, %v320
    %v337 = vcombine.high %v327, %v327
    %v338 = vld [vmem:[%s1] sm:$0xf]
    %v339 = vld [vmem:[%s1 + $0x4] sm:$0xf]
    %v340 = vld [vmem:[%s1 + $0x8] sm:$0xf]
    %v341 = vld [vmem:[%s1 + $0xc] sm:$0xf]
    %v342 = vld [vmem:[%s1 + $0x10] sm:$0xf]
    %v343 = vld [vmem:[%s1 + $0x14] sm:$0xf]
    %v344 = vcombine.low %v167, %v181
    %v345 = vcombine.low %v189, %v191
    %v346 = vcombine.low %v174, %v188
    %v347 = vcombine.low %v190, %v192
    %v349 = vunpack.c.l.s4 1966171168
    %v350 = vunpack.c.0.s8 %v349
    %v351 = vlaneseq
    %v352 = vshrl.u32 %v351, 7
    %v353 = vsub.s32 %v350, %v352
    %v354 = vrot.slane %v344, %v353
    %v356 = vunpack.c.l.s4 1966171168
    %v357 = vunpack.c.0.s8 %v356
    %v358 = vlaneseq
    %v359 = vshrl.u32 %v358, 7
    %v360 = vsub.s32 %v357, %v359
    %v361 = vrot.slane %v345, %v360
    %v363 = vunpack.c.l.s4 1966171168
    %v364 = vunpack.c.0.s8 %v363
    %v365 = vlaneseq
    %v366 = vshrl.u32 %v365, 7
    %v367 = vsub.s32 %v364, %v366
    %v368 = vrot.slane %v346, %v367
    %v370 = vunpack.c.l.s4 1966171168
    %v371 = vunpack.c.0.s8 %v370
    %v372 = vlaneseq
    %v373 = vshrl.u32 %v372, 7
    %v374 = vsub.s32 %v371, %v373
    %v375 = vrot.slane %v347, %v374
    %v376 = vcombine.low %v354, %v361
    %v377 = vcombine.low %v368, %v375
    %v379 = vunpack.c.l.s4 1966171168
    %v380 = vunpack.c.0.s8 %v379
    %v381 = vlaneseq
    %v382 = vshrl.u32 %v381, 7
    %v383 = vsub.s32 %v380, %v382
    %v384 = vrot.slane %v376, %v383
    %v386 = vunpack.c.l.s4 1966171168
    %v387 = vunpack.c.0.s8 %v386
    %v388 = vlaneseq
    %v389 = vshrl.u32 %v388, 7
    %v390 = vsub.s32 %v387, %v389
    %v391 = vrot.slane %v377, %v390
    %v392 = vcombine.low %v384, %v391
    %v393 = vcombine.low %v216, %v230
    %v394 = vcombine.low %v238, %v240
    %v395 = vcombine.low %v223, %v237
    %v396 = vcombine.low %v239, %v264
    %v398 = vunpack.c.l.s4 1966171168
    %v399 = vunpack.c.0.s8 %v398
    %v400 = vlaneseq
    %v401 = vshrl.u32 %v400, 7
    %v402 = vsub.s32 %v399, %v401
    %v403 = vrot.slane %v393, %v402
    %v405 = vunpack.c.l.s4 1966171168
    %v406 = vunpack.c.0.s8 %v405
    %v407 = vlaneseq
    %v408 = vshrl.u32 %v407, 7
    %v409 = vsub.s32 %v406, %v408
    %v410 = vrot.slane %v394, %v409
    %v412 = vunpack.c.l.s4 1966171168
    %v413 = vunpack.c.0.s8 %v412
    %v414 = vlaneseq
    %v415 = vshrl.u32 %v414, 7
    %v416 = vsub.s32 %v413, %v415
    %v417 = vrot.slane %v395, %v416
    %v419 = vunpack.c.l.s4 1966171168
    %v420 = vunpack.c.0.s8 %v419
    %v421 = vlaneseq
    %v422 = vshrl.u32 %v421, 7
    %v423 = vsub.s32 %v420, %v422
    %v424 = vrot.slane %v396, %v423
    %v425 = vcombine.low %v403, %v410
    %v426 = vcombine.low %v417, %v424
    %v428 = vunpack.c.l.s4 1966171168
    %v429 = vunpack.c.0.s8 %v428
    %v430 = vlaneseq
    %v431 = vshrl.u32 %v430, 7
    %v432 = vsub.s32 %v429, %v431
    %v433 = vrot.slane %v425, %v432
    %v435 = vunpack.c.l.s4 1966171168
    %v436 = vunpack.c.0.s8 %v435
    %v437 = vlaneseq
    %v438 = vshrl.u32 %v437, 7
    %v439 = vsub.s32 %v436, %v438
    %v440 = vrot.slane %v426, %v439
    %v441 = vcombine.low %v433, %v440
    %v442 = vcombine.low %v278, %v286
    %v443 = vcombine.low %v288, %v271
    %v444 = vcombine.low %v285, %v287
    %v445 = vcombine.low %v289, %v313
    %v447 = vunpack.c.l.s4 1966171168
    %v448 = vunpack.c.0.s8 %v447
    %v449 = vlaneseq
    %v450 = vshrl.u32 %v449, 7
    %v451 = vsub.s32 %v448, %v450
    %v452 = vrot.slane %v442, %v451
    %v454 = vunpack.c.l.s4 1966171168
    %v455 = vunpack.c.0.s8 %v454
    %v456 = vlaneseq
    %v457 = vshrl.u32 %v456, 7
    %v458 = vsub.s32 %v455, %v457
    %v459 = vrot.slane %v443, %v458
    %v461 = vunpack.c.l.s4 1966171168
    %v462 = vunpack.c.0.s8 %v461
    %v463 = vlaneseq
    %v464 = vshrl.u32 %v463, 7
    %v465 = vsub.s32 %v462, %v464
    %v466 = vrot.slane %v444, %v465
    %v468 = vunpack.c.l.s4 1966171168
    %v469 = vunpack.c.0.s8 %v468
    %v470 = vlaneseq
    %v471 = vshrl.u32 %v470, 7
    %v472 = vsub.s32 %v469, %v471
    %v473 = vrot.slane %v445, %v472
    %v474 = vcombine.low %v452, %v459
    %v475 = vcombine.low %v466, %v473
    %v477 = vunpack.c.l.s4 1966171168
    %v478 = vunpack.c.0.s8 %v477
    %v479 = vlaneseq
    %v480 = vshrl.u32 %v479, 7
    %v481 = vsub.s32 %v478, %v480
    %v482 = vrot.slane %v474, %v481
    %v484 = vunpack.c.l.s4 1966171168
    %v485 = vunpack.c.0.s8 %v484
    %v486 = vlaneseq
    %v487 = vshrl.u32 %v486, 7
    %v488 = vsub.s32 %v485, %v487
    %v489 = vrot.slane %v475, %v488
    %v490 = vcombine.low %v482, %v489
    %v491 = vcombine.low %v327, %v335
    %v492 = vcombine.low %v337, %v320
    %v493 = vcombine.low %v334, %v336
    %v495 = vunpack.c.l.s4 1966171168
    %v496 = vunpack.c.0.s8 %v495
    %v497 = vlaneseq
    %v498 = vshrl.u32 %v497, 7
    %v499 = vsub.s32 %v496, %v498
    %v500 = vrot.slane %v491, %v499
    %v502 = vunpack.c.l.s4 1966171168
    %v503 = vunpack.c.0.s8 %v502
    %v504 = vlaneseq
    %v505 = vshrl.u32 %v504, 7
    %v506 = vsub.s32 %v503, %v505
    %v507 = vrot.slane %v492, %v506
    %v509 = vunpack.c.l.s4 1966171168
    %v510 = vunpack.c.0.s8 %v509
    %v511 = vlaneseq
    %v512 = vshrl.u32 %v511, 7
    %v513 = vsub.s32 %v510, %v512
    %v514 = vrot.slane %v493, %v513
    %v515 = vcombine.low %v500, %v507
    %v517 = vunpack.c.l.s4 1966171168
    %v518 = vunpack.c.0.s8 %v517
    %v519 = vlaneseq
    %v520 = vshrl.u32 %v519, 7
    %v521 = vsub.s32 %v518, %v520
    %v522 = vrot.slane %v515, %v521
    %v524 = vunpack.c.l.s4 1966171168
    %v525 = vunpack.c.0.s8 %v524
    %v526 = vlaneseq
    %v527 = vshrl.u32 %v526, 7
    %v528 = vsub.s32 %v525, %v527
    %v529 = vrot.slane %v514, %v528
    %v530 = vcombine.low %v522, %v529
    %v537 = vunpack.c.l.b16 %v338
    %v538 = vunpack.c.l.b16 %v339
    %v539 = vunpack.c.l.b16 %v340
    %v540 = vunpack.c.l.b16 %v341
    %v541 = vunpack.c.l.b16 %v342
    %v542 = vunpack.c.l.b16 %v343
    %v543 = vpack.c.b16 %v538, %v537
    %v544 = vpack.c.b16 %v540, %v539
    %v545 = vpack.c.b16 %v542, %v541
    %vm549 = vcmask 392192
    %v551 = vsel %vm549, %v392, 0
    %v554 = vsel %vm549, %v441, 0
    %v557 = vsel %vm549, %v490, 0
    %v560 = vsel %vm549, %v530, 0
    %562 = vmatprep.subr.bf16.mxu0 0
    %563 = vmatpush1.bf16.msra.mxu0 %v543
    %564 = vmatprep.subr.bf16.mxu0 0
    %565 = vmatpush1.bf16.msra.mxu0 %v544
    %566 = vmatprep.subr.bf16.mxu0 0
    %567 = vmatpush1.bf16.msra.mxu0 %v545
    %568 = vmatprep.subr.bf16.mxu0 0
    %569 = vmatpush1.bf16.msra.mxu0 0
    %570 = vmatprep.subr.bf16.mxu0 0
    %571 = vmatpush1.bf16.msra.mxu0 0
    %572 = vmatprep.subr.bf16.mxu0 0
    %573 = vmatpush1.bf16.msra.mxu0 0
    %574 = vmatprep.subr.bf16.mxu0 0
    %575 = vmatpush1.bf16.msra.mxu0 0
    %576 = vmatprep.subr.bf16.mxu0 0
    %577 = vmatpush1.bf16.msra.mxu0 0
    %578 = vmatprep.subr.bf16.mxu0 0
    %579 = vmatpush1.bf16.msra.mxu0 0
    %580 = vmatprep.subr.bf16.mxu0 0
    %581 = vmatpush1.bf16.msra.mxu0 0
    %582 = vmatprep.subr.bf16.mxu0 0
    %583 = vmatpush1.bf16.msra.mxu0 0
    %584 = vmatprep.subr.bf16.mxu0 0
    %585 = vmatpush1.bf16.msra.mxu0 0
    %586 = vmatprep.subr.bf16.mxu0 0
    %587 = vmatpush1.bf16.msra.mxu0 0
    %588 = vmatprep.subr.bf16.mxu0 0
    %589 = vmatpush1.bf16.msra.mxu0 0
    %590 = vmatprep.subr.bf16.mxu0 0
    %591 = vmatpush1.bf16.msra.mxu0 0
    %592 = vmatprep.subr.bf16.mxu0 0
    %593 = vmatpush1.bf16.msra.mxu0 0
    %594 = vmatprep.mubr.bf16.mxu0 0
    %595 = vmatmul.mubr.bf16.gmra.mrb[0].mxu0 %v551
    %v596 = vpop.f32.mrb[0].mxu0
    %v597 = vadd.f32 0.0, %v596
    %v598 = vpop.f32.mrb[0].mxu0
    %v599 = vpop.f32.mrb[0].mxu0
    %v600 = vadd.f32 0.0, %v599
    %v601 = vpop.f32.mrb[0].mxu0
    %602 = vmatprep.mubr.bf16.mxu0 0
    %603 = vmatmul.mubr.bf16.gmra.mrb[0].mxu0 %v554
    %v604 = vpop.f32.mrb[0].mxu0
    %v605 = vadd.f32 0.0, %v604
    %v606 = vpop.f32.mrb[0].mxu0
    %v607 = vpop.f32.mrb[0].mxu0
    %v608 = vadd.f32 0.0, %v607
    %v609 = vpop.f32.mrb[0].mxu0
    %610 = vmatprep.mubr.bf16.mxu0 0
    %611 = vmatmul.mubr.bf16.gmra.mrb[0].mxu0 %v557
    %v612 = vpop.f32.mrb[0].mxu0
    %v613 = vadd.f32 0.0, %v612
    %v614 = vpop.f32.mrb[0].mxu0
    %v615 = vpop.f32.mrb[0].mxu0
    %v616 = vadd.f32 0.0, %v615
    %v617 = vpop.f32.mrb[0].mxu0
    %618 = vmatprep.mubr.bf16.mxu0 0
    %619 = vmatmul.mubr.bf16.gmra.mrb[0].mxu0 %v560
    %v620 = vpop.f32.mrb[0].mxu0
    %v621 = vadd.f32 0.0, %v620
    %v622 = vpop.f32.mrb[0].mxu0
    %v623 = vpop.f32.mrb[0].mxu0
    %v624 = vadd.f32 0.0, %v623
    %v625 = vpop.f32.mrb[0].mxu0
    %626 = vdwg.mxu0
    %v635 = vcombine.high %v597, %v597
    %v637 = vunpack.c.l.s4 1983009808
    %v638 = vunpack.c.0.s8 %v637
    %v639 = vlaneseq
    %v640 = vshrl.u32 %v639, 7
    %v641 = vsub.s32 %v638, %v640
    %v642 = vrot.slane %v597, %v641
    %v644 = vunpack.c.l.s4 1983009808
    %v645 = vunpack.c.0.s8 %v644
    %v646 = vlaneseq
    %v647 = vshrl.u32 %v646, 7
    %v648 = vsub.s32 %v645, %v647
    %v649 = vrot.slane %v635, %v648
    %v650 = vcombine.high %v642, %v642
    %v651 = vcombine.high %v649, %v649
    %v652 = vcombine.high %v600, %v600
    %v654 = vunpack.c.l.s4 1983009808
    %v655 = vunpack.c.0.s8 %v654
    %v656 = vlaneseq
    %v657 = vshrl.u32 %v656, 7
    %v658 = vsub.s32 %v655, %v657
    %v659 = vrot.slane %v600, %v658
    %v661 = vunpack.c.l.s4 1983009808
    %v662 = vunpack.c.0.s8 %v661
    %v663 = vlaneseq
    %v664 = vshrl.u32 %v663, 7
    %v665 = vsub.s32 %v662, %v664
    %v666 = vrot.slane %v652, %v665
    %v667 = vcombine.high %v659, %v659
    %v668 = vcombine.high %v666, %v666
    %v669 = vcombine.high %v605, %v605
    %v671 = vunpack.c.l.s4 1983009808
    %v672 = vunpack.c.0.s8 %v671
    %v673 = vlaneseq
    %v674 = vshrl.u32 %v673, 7
    %v675 = vsub.s32 %v672, %v674
    %v676 = vrot.slane %v605, %v675
    %v678 = vunpack.c.l.s4 1983009808
    %v679 = vunpack.c.0.s8 %v678
    %v680 = vlaneseq
    %v681 = vshrl.u32 %v680, 7
    %v682 = vsub.s32 %v679, %v681
    %v683 = vrot.slane %v669, %v682
    %v684 = vcombine.high %v676, %v676
    %v685 = vcombine.high %v683, %v683
    %v686 = vcombine.high %v608, %v608
    %v688 = vunpack.c.l.s4 1983009808
    %v689 = vunpack.c.0.s8 %v688
    %v690 = vlaneseq
    %v691 = vshrl.u32 %v690, 7
    %v692 = vsub.s32 %v689, %v691
    %v693 = vrot.slane %v608, %v692
    %v695 = vunpack.c.l.s4 1983009808
    %v696 = vunpack.c.0.s8 %v695
    %v697 = vlaneseq
    %v698 = vshrl.u32 %v697, 7
    %v699 = vsub.s32 %v696, %v698
    %v700 = vrot.slane %v686, %v699
    %v701 = vcombine.high %v693, %v693
    %v702 = vcombine.high %v700, %v700
    %v703 = vcombine.high %v613, %v613
    %v705 = vunpack.c.l.s4 1983009808
    %v706 = vunpack.c.0.s8 %v705
    %v707 = vlaneseq
    %v708 = vshrl.u32 %v707, 7
    %v709 = vsub.s32 %v706, %v708
    %v710 = vrot.slane %v613, %v709
    %v712 = vunpack.c.l.s4 1983009808
    %v713 = vunpack.c.0.s8 %v712
    %v714 = vlaneseq
    %v715 = vshrl.u32 %v714, 7
    %v716 = vsub.s32 %v713, %v715
    %v717 = vrot.slane %v703, %v716
    %v718 = vcombine.high %v710, %v710
    %v719 = vcombine.high %v717, %v717
    %v720 = vcombine.high %v616, %v616
    %v722 = vunpack.c.l.s4 1983009808
    %v723 = vunpack.c.0.s8 %v722
    %v724 = vlaneseq
    %v725 = vshrl.u32 %v724, 7
    %v726 = vsub.s32 %v723, %v725
    %v727 = vrot.slane %v616, %v726
    %v729 = vunpack.c.l.s4 1983009808
    %v730 = vunpack.c.0.s8 %v729
    %v731 = vlaneseq
    %v732 = vshrl.u32 %v731, 7
    %v733 = vsub.s32 %v730, %v732
    %v734 = vrot.slane %v720, %v733
    %v735 = vcombine.high %v727, %v727
    %v736 = vcombine.high %v734, %v734
    %v737 = vcombine.high %v621, %v621
    %v739 = vunpack.c.l.s4 1983009808
    %v740 = vunpack.c.0.s8 %v739
    %v741 = vlaneseq
    %v742 = vshrl.u32 %v741, 7
    %v743 = vsub.s32 %v740, %v742
    %v744 = vrot.slane %v621, %v743
    %v746 = vunpack.c.l.s4 1983009808
    %v747 = vunpack.c.0.s8 %v746
    %v748 = vlaneseq
    %v749 = vshrl.u32 %v748, 7
    %v750 = vsub.s32 %v747, %v749
    %v751 = vrot.slane %v737, %v750
    %v752 = vcombine.high %v744, %v744
    %v753 = vcombine.high %v751, %v751
    %v755 = vunpack.c.l.s4 1983009808
    %v756 = vunpack.c.0.s8 %v755
    %v757 = vlaneseq
    %v758 = vshrl.u32 %v757, 7
    %v759 = vsub.s32 %v756, %v758
    %v760 = vrot.slane %v624, %v759
    %v761 = vcombine.high %v760, %v760
    %v792 = vld [vmem:[%s3] sm:$0x1]
    %v794 = vlaneseq
    %v795 = vshrl.u32 %v794, 7
    %v796 = vsub.s32 0, %v795
    %v797 = vrot.slane %v792, %v796
    %v798 = vcombine.high %v797, %v797
    %v800 = vunpack.c.l.s4 1983009808
    %v801 = vunpack.c.0.s8 %v800
    %v802 = vlaneseq
    %v803 = vshrl.u32 %v802, 7
    %v804 = vsub.s32 %v801, %v803
    %v805 = vrot.slane %v797, %v804
    %v807 = vunpack.c.l.s4 1983009808
    %v808 = vunpack.c.0.s8 %v807
    %v809 = vlaneseq
    %v810 = vshrl.u32 %v809, 7
    %v811 = vsub.s32 %v808, %v810
    %v812 = vrot.slane %v798, %v811
    %v813 = vcombine.high %v805, %v805
    %v814 = vcombine.high %v812, %v812
    %v819 = vadd.f32 %v642, %v805
    %v820 = vadd.f32 %v650, %v813
    %v821 = vadd.f32 %v649, %v812
    %v822 = vadd.f32 %v651, %v814
    %v823 = vadd.f32 %v659, %v805
    %v824 = vadd.f32 %v667, %v813
    %v825 = vadd.f32 %v666, %v812
    %v826 = vadd.f32 %v668, %v814
    %v827 = vadd.f32 %v676, %v805
    %v828 = vadd.f32 %v684, %v813
    %v829 = vadd.f32 %v683, %v812
    %v830 = vadd.f32 %v685, %v814
    %v831 = vadd.f32 %v693, %v805
    %v832 = vadd.f32 %v701, %v813
    %v833 = vadd.f32 %v700, %v812
    %v834 = vadd.f32 %v702, %v805
    %v835 = vadd.f32 %v710, %v813
    %v836 = vadd.f32 %v718, %v812
    %v837 = vadd.f32 %v717, %v814
    %v838 = vadd.f32 %v719, %v805
    %v839 = vadd.f32 %v727, %v813
    %v840 = vadd.f32 %v735, %v812
    %v841 = vadd.f32 %v734, %v814
    %v842 = vadd.f32 %v736, %v805
    %v843 = vadd.f32 %v744, %v813
    %v844 = vadd.f32 %v752, %v812
    %v845 = vadd.f32 %v751, %v814
    %v846 = vadd.f32 %v753, %v805
    %v847 = vadd.f32 %v760, %v813
    %v848 = vadd.f32 %v761, %v812
    %v849 = vmax.f32 %v819, 0.0
    %v850 = vmax.f32 %v820, 0.0
    %v851 = vmax.f32 %v821, 0.0
    %v852 = vmax.f32 %v822, 0.0
    %v853 = vmax.f32 %v823, 0.0
    %v854 = vmax.f32 %v824, 0.0
    %v855 = vmax.f32 %v825, 0.0
    %v856 = vmax.f32 %v826, 0.0
    %v857 = vmax.f32 %v827, 0.0
    %v858 = vmax.f32 %v828, 0.0
    %v859 = vmax.f32 %v829, 0.0
    %v860 = vmax.f32 %v830, 0.0
    %v861 = vmax.f32 %v831, 0.0
    %v862 = vmax.f32 %v832, 0.0
    %v863 = vmax.f32 %v833, 0.0
    %v864 = vmax.f32 %v834, 0.0
    %v865 = vmax.f32 %v835, 0.0
    %v866 = vmax.f32 %v836, 0.0
    %v867 = vmax.f32 %v837, 0.0
    %v868 = vmax.f32 %v838, 0.0
    %v869 = vmax.f32 %v839, 0.0
    %v870 = vmax.f32 %v840, 0.0
    %v871 = vmax.f32 %v841, 0.0
    %v872 = vmax.f32 %v842, 0.0
    %v873 = vmax.f32 %v843, 0.0
    %v874 = vmax.f32 %v844, 0.0
    %v875 = vmax.f32 %v845, 0.0
    %v876 = vmax.f32 %v846, 0.0
    %v877 = vmax.f32 %v847, 0.0
    %v878 = vmax.f32 %v848, 0.0
    %vm879 = vcmask 254976
    %v880 = vsel %vm879, %v849, -inf
    %v881 = vrot.slane %v880, 4
    %v882 = vmax.f32 %v880, %v881
    %v883 = vrot.slane %v882, 2
    %v884 = vmax.f32 %v882, %v883
    %v885 = vrot.slane %v884, 1
    %v886 = vmax.f32 %v884, %v885
    %v887 = vsel %vm879, %v850, -inf
    %v888 = vrot.slane %v887, 4
    %v889 = vmax.f32 %v887, %v888
    %v890 = vrot.slane %v889, 2
    %v891 = vmax.f32 %v889, %v890
    %v892 = vrot.slane %v891, 1
    %v893 = vmax.f32 %v891, %v892
    %v894 = vsel %vm879, %v851, -inf
    %v895 = vrot.slane %v894, 4
    %v896 = vmax.f32 %v894, %v895
    %v897 = vrot.slane %v896, 2
    %v898 = vmax.f32 %v896, %v897
    %v899 = vrot.slane %v898, 1
    %v900 = vmax.f32 %v898, %v899
    %v901 = vsel %vm879, %v852, -inf
    %v902 = vrot.slane %v901, 4
    %v903 = vmax.f32 %v901, %v902
    %v904 = vrot.slane %v903, 2
    %v905 = vmax.f32 %v903, %v904
    %v906 = vrot.slane %v905, 1
    %v907 = vmax.f32 %v905, %v906
    %v908 = vsel %vm879, %v853, -inf
    %v909 = vrot.slane %v908, 4
    %v910 = vmax.f32 %v908, %v909
    %v911 = vrot.slane %v910, 2
    %v912 = vmax.f32 %v910, %v911
    %v913 = vrot.slane %v912, 1
    %v914 = vmax.f32 %v912, %v913
    %v915 = vsel %vm879, %v854, -inf
    %v916 = vrot.slane %v915, 4
    %v917 = vmax.f32 %v915, %v916
    %v918 = vrot.slane %v917, 2
    %v919 = vmax.f32 %v917, %v918
    %v920 = vrot.slane %v919, 1
    %v921 = vmax.f32 %v919, %v920
    %v922 = vsel %vm879, %v855, -inf
    %v923 = vrot.slane %v922, 4
    %v924 = vmax.f32 %v922, %v923
    %v925 = vrot.slane %v924, 2
    %v926 = vmax.f32 %v924, %v925
    %v927 = vrot.slane %v926, 1
    %v928 = vmax.f32 %v926, %v927
    %v929 = vsel %vm879, %v856, -inf
    %v930 = vrot.slane %v929, 4
    %v931 = vmax.f32 %v929, %v930
    %v932 = vrot.slane %v931, 2
    %v933 = vmax.f32 %v931, %v932
    %v934 = vrot.slane %v933, 1
    %v935 = vmax.f32 %v933, %v934
    %v936 = vsel %vm879, %v857, -inf
    %v937 = vrot.slane %v936, 4
    %v938 = vmax.f32 %v936, %v937
    %v939 = vrot.slane %v938, 2
    %v940 = vmax.f32 %v938, %v939
    %v941 = vrot.slane %v940, 1
    %v942 = vmax.f32 %v940, %v941
    %v943 = vsel %vm879, %v858, -inf
    %v944 = vrot.slane %v943, 4
    %v945 = vmax.f32 %v943, %v944
    %v946 = vrot.slane %v945, 2
    %v947 = vmax.f32 %v945, %v946
    %v948 = vrot.slane %v947, 1
    %v949 = vmax.f32 %v947, %v948
    %v950 = vsel %vm879, %v859, -inf
    %v951 = vrot.slane %v950, 4
    %v952 = vmax.f32 %v950, %v951
    %v953 = vrot.slane %v952, 2
    %v954 = vmax.f32 %v952, %v953
    %v955 = vrot.slane %v954, 1
    %v956 = vmax.f32 %v954, %v955
    %v957 = vsel %vm879, %v860, -inf
    %v958 = vrot.slane %v957, 4
    %v959 = vmax.f32 %v957, %v958
    %v960 = vrot.slane %v959, 2
    %v961 = vmax.f32 %v959, %v960
    %v962 = vrot.slane %v961, 1
    %v963 = vmax.f32 %v961, %v962
    %v964 = vsel %vm879, %v861, -inf
    %v965 = vrot.slane %v964, 4
    %v966 = vmax.f32 %v964, %v965
    %v967 = vrot.slane %v966, 2
    %v968 = vmax.f32 %v966, %v967
    %v969 = vrot.slane %v968, 1
    %v970 = vmax.f32 %v968, %v969
    %v971 = vsel %vm879, %v862, -inf
    %v972 = vrot.slane %v971, 4
    %v973 = vmax.f32 %v971, %v972
    %v974 = vrot.slane %v973, 2
    %v975 = vmax.f32 %v973, %v974
    %v976 = vrot.slane %v975, 1
    %v977 = vmax.f32 %v975, %v976
    %v978 = vsel %vm879, %v863, -inf
    %v979 = vrot.slane %v978, 4
    %v980 = vmax.f32 %v978, %v979
    %v981 = vrot.slane %v980, 2
    %v982 = vmax.f32 %v980, %v981
    %v983 = vrot.slane %v982, 1
    %v984 = vmax.f32 %v982, %v983
    %v985 = vsel %vm879, %v864, -inf
    %v986 = vrot.slane %v985, 4
    %v987 = vmax.f32 %v985, %v986
    %v988 = vrot.slane %v987, 2
    %v989 = vmax.f32 %v987, %v988
    %v990 = vrot.slane %v989, 1
    %v991 = vmax.f32 %v989, %v990
    %v992 = vsel %vm879, %v865, -inf
    %v993 = vrot.slane %v992, 4
    %v994 = vmax.f32 %v992, %v993
    %v995 = vrot.slane %v994, 2
    %v996 = vmax.f32 %v994, %v995
    %v997 = vrot.slane %v996, 1
    %v998 = vmax.f32 %v996, %v997
    %v999 = vsel %vm879, %v866, -inf
    %v1000 = vrot.slane %v999, 4
    %v1001 = vmax.f32 %v999, %v1000
    %v1002 = vrot.slane %v1001, 2
    %v1003 = vmax.f32 %v1001, %v1002
    %v1004 = vrot.slane %v1003, 1
    %v1005 = vmax.f32 %v1003, %v1004
    %v1006 = vsel %vm879, %v867, -inf
    %v1007 = vrot.slane %v1006, 4
    %v1008 = vmax.f32 %v1006, %v1007
    %v1009 = vrot.slane %v1008, 2
    %v1010 = vmax.f32 %v1008, %v1009
    %v1011 = vrot.slane %v1010, 1
    %v1012 = vmax.f32 %v1010, %v1011
    %v1013 = vsel %vm879, %v868, -inf
    %v1014 = vrot.slane %v1013, 4
    %v1015 = vmax.f32 %v1013, %v1014
    %v1016 = vrot.slane %v1015, 2
    %v1017 = vmax.f32 %v1015, %v1016
    %v1018 = vrot.slane %v1017, 1
    %v1019 = vmax.f32 %v1017, %v1018
    %v1020 = vsel %vm879, %v869, -inf
    %v1021 = vrot.slane %v1020, 4
    %v1022 = vmax.f32 %v1020, %v1021
    %v1023 = vrot.slane %v1022, 2
    %v1024 = vmax.f32 %v1022, %v1023
    %v1025 = vrot.slane %v1024, 1
    %v1026 = vmax.f32 %v1024, %v1025
    %v1027 = vsel %vm879, %v870, -inf
    %v1028 = vrot.slane %v1027, 4
    %v1029 = vmax.f32 %v1027, %v1028
    %v1030 = vrot.slane %v1029, 2
    %v1031 = vmax.f32 %v1029, %v1030
    %v1032 = vrot.slane %v1031, 1
    %v1033 = vmax.f32 %v1031, %v1032
    %v1034 = vsel %vm879, %v871, -inf
    %v1035 = vrot.slane %v1034, 4
    %v1036 = vmax.f32 %v1034, %v1035
    %v1037 = vrot.slane %v1036, 2
    %v1038 = vmax.f32 %v1036, %v1037
    %v1039 = vrot.slane %v1038, 1
    %v1040 = vmax.f32 %v1038, %v1039
    %v1041 = vsel %vm879, %v872, -inf
    %v1042 = vrot.slane %v1041, 4
    %v1043 = vmax.f32 %v1041, %v1042
    %v1044 = vrot.slane %v1043, 2
    %v1045 = vmax.f32 %v1043, %v1044
    %v1046 = vrot.slane %v1045, 1
    %v1047 = vmax.f32 %v1045, %v1046
    %v1048 = vsel %vm879, %v873, -inf
    %v1049 = vrot.slane %v1048, 4
    %v1050 = vmax.f32 %v1048, %v1049
    %v1051 = vrot.slane %v1050, 2
    %v1052 = vmax.f32 %v1050, %v1051
    %v1053 = vrot.slane %v1052, 1
    %v1054 = vmax.f32 %v1052, %v1053
    %v1055 = vsel %vm879, %v874, -inf
    %v1056 = vrot.slane %v1055, 4
    %v1057 = vmax.f32 %v1055, %v1056
    %v1058 = vrot.slane %v1057, 2
    %v1059 = vmax.f32 %v1057, %v1058
    %v1060 = vrot.slane %v1059, 1
    %v1061 = vmax.f32 %v1059, %v1060
    %v1062 = vsel %vm879, %v875, -inf
    %v1063 = vrot.slane %v1062, 4
    %v1064 = vmax.f32 %v1062, %v1063
    %v1065 = vrot.slane %v1064, 2
    %v1066 = vmax.f32 %v1064, %v1065
    %v1067 = vrot.slane %v1066, 1
    %v1068 = vmax.f32 %v1066, %v1067
    %v1069 = vsel %vm879, %v876, -inf
    %v1070 = vrot.slane %v1069, 4
    %v1071 = vmax.f32 %v1069, %v1070
    %v1072 = vrot.slane %v1071, 2
    %v1073 = vmax.f32 %v1071, %v1072
    %v1074 = vrot.slane %v1073, 1
    %v1075 = vmax.f32 %v1073, %v1074
    %v1076 = vsel %vm879, %v877, -inf
    %v1077 = vrot.slane %v1076, 4
    %v1078 = vmax.f32 %v1076, %v1077
    %v1079 = vrot.slane %v1078, 2
    %v1080 = vmax.f32 %v1078, %v1079
    %v1081 = vrot.slane %v1080, 1
    %v1082 = vmax.f32 %v1080, %v1081
    %v1083 = vsel %vm879, %v878, -inf
    %v1084 = vrot.slane %v1083, 4
    %v1085 = vmax.f32 %v1083, %v1084
    %v1086 = vrot.slane %v1085, 2
    %v1087 = vmax.f32 %v1085, %v1086
    %v1088 = vrot.slane %v1087, 1
    %v1089 = vmax.f32 %v1087, %v1088
    %v1090 = vpack.c.bf16 %v886, %v886
    %v1091 = vpack.c.bf16 %v893, %v893
    %v1092 = vpack.c.bf16 %v900, %v900
    %v1093 = vpack.c.bf16 %v907, %v907
    %v1094 = vpack.c.bf16 %v914, %v914
    %v1095 = vpack.c.bf16 %v921, %v921
    %v1096 = vpack.c.bf16 %v928, %v928
    %v1097 = vpack.c.bf16 %v935, %v935
    %v1098 = vpack.c.bf16 %v942, %v942
    %v1099 = vpack.c.bf16 %v949, %v949
    %v1100 = vpack.c.bf16 %v956, %v956
    %v1101 = vpack.c.bf16 %v963, %v963
    %v1102 = vpack.c.bf16 %v970, %v970
    %v1103 = vpack.c.bf16 %v977, %v977
    %v1104 = vpack.c.bf16 %v984, %v984
    %v1105 = vpack.c.bf16 %v991, %v991
    %v1106 = vpack.c.bf16 %v998, %v998
    %v1107 = vpack.c.bf16 %v1005, %v1005
    %v1108 = vpack.c.bf16 %v1012, %v1012
    %v1109 = vpack.c.bf16 %v1019, %v1019
    %v1110 = vpack.c.bf16 %v1026, %v1026
    %v1111 = vpack.c.bf16 %v1033, %v1033
    %v1112 = vpack.c.bf16 %v1040, %v1040
    %v1113 = vpack.c.bf16 %v1047, %v1047
    %v1114 = vpack.c.bf16 %v1054, %v1054
    %v1115 = vpack.c.bf16 %v1061, %v1061
    %v1116 = vpack.c.bf16 %v1068, %v1068
    %v1117 = vpack.c.bf16 %v1075, %v1075
    %v1118 = vpack.c.bf16 %v1082, %v1082
    %v1119 = vpack.c.bf16 %v1089, %v1089
    %v1146 = vunpack.c.l.b16 %v1090
    %v1147 = vunpack.c.l.b16 %v1091
    %v1148 = vunpack.c.l.b16 %v1092
    %v1149 = vunpack.c.l.b16 %v1093
    %v1150 = vunpack.c.l.b16 %v1094
    %v1151 = vunpack.c.l.b16 %v1095
    %v1152 = vunpack.c.l.b16 %v1096
    %v1153 = vunpack.c.l.b16 %v1097
    %v1154 = vunpack.c.l.b16 %v1098
    %v1155 = vunpack.c.l.b16 %v1099
    %v1156 = vunpack.c.l.b16 %v1100
    %v1157 = vunpack.c.l.b16 %v1101
    %v1158 = vunpack.c.l.b16 %v1102
    %v1159 = vunpack.c.l.b16 %v1105
    %v1160 = vunpack.c.l.b16 %v1106
    %v1161 = vunpack.c.l.b16 %v1107
    %v1162 = vunpack.c.l.b16 %v1108
    %v1163 = vunpack.c.l.b16 %v1109
    %v1164 = vunpack.c.l.b16 %v1110
    %v1165 = vunpack.c.l.b16 %v1111
    %v1166 = vunpack.c.l.b16 %v1112
    %v1167 = vunpack.c.l.b16 %v1113
    %v1168 = vunpack.c.l.b16 %v1114
    %v1169 = vunpack.c.l.b16 %v1115
    %v1170 = vunpack.c.l.b16 %v1116
    %v1171 = vunpack.c.l.b16 %v1117
    %vm1172 = vcmask 1041409
    %v1173 = vsel %vm1172, %v1147, %v1146
    %vm1174 = vcmask 1042434
    %v1175 = vsel %vm1174, %v1148, %v1173
    %vm1176 = vcmask 1043459
    %v1177 = vsel %vm1176, %v1149, %v1175
    %vm1178 = vcmask 1044484
    %v1179 = vsel %vm1178, %v1150, %v1177
    %vm1180 = vcmask 1045509
    %v1181 = vsel %vm1180, %v1151, %v1179
    %vm1182 = vcmask 1046534
    %v1183 = vsel %vm1182, %v1152, %v1181
    %vm1184 = vcmask 1047559
    %v1185 = vsel %vm1184, %v1153, %v1183
    %v1186 = vsel %vm1172, %v1155, %v1154
    %v1187 = vsel %vm1174, %v1156, %v1186
    %v1188 = vsel %vm1176, %v1157, %v1187
    %v1189 = vsel %vm1178, %v1158, %v1188
    %v1190 = vsel %vm1172, %v1160, %v1159
    %v1191 = vsel %vm1174, %v1161, %v1190
    %v1192 = vsel %vm1176, %v1162, %v1191
    %v1193 = vsel %vm1178, %v1163, %v1192
    %v1194 = vsel %vm1180, %v1164, %v1193
    %v1195 = vsel %vm1182, %v1165, %v1194
    %v1196 = vsel %vm1184, %v1166, %v1195
    %v1197 = vsel %vm1172, %v1168, %v1167
    %v1198 = vsel %vm1174, %v1169, %v1197
    %v1199 = vsel %vm1176, %v1170, %v1198
    %v1200 = vsel %vm1178, %v1171, %v1199
    %v1201 = vpack.c.b16 %v1189, %v1185
    %v1202 = vpack.c.b16 %v1200, %v1196
    %v1205 = vunpack.c.l.b16 %v1103
    %v1206 = vunpack.c.l.b16 %v1118
    %v1207 = vsel %vm1172, %v1148, %v1147
    %v1208 = vsel %vm1174, %v1149, %v1207
    %v1209 = vsel %vm1176, %v1150, %v1208
    %v1210 = vsel %vm1178, %v1151, %v1209
    %v1211 = vsel %vm1180, %v1152, %v1210
    %v1212 = vsel %vm1182, %v1153, %v1211
    %v1213 = vsel %vm1184, %v1154, %v1212
    %v1214 = vsel %vm1172, %v1156, %v1155
    %v1215 = vsel %vm1174, %v1157, %v1214
    %v1216 = vsel %vm1176, %v1158, %v1215
    %v1217 = vsel %vm1178, %v1205, %v1216
    %v1218 = vsel %vm1172, %v1161, %v1160
    %v1219 = vsel %vm1174, %v1162, %v1218
    %v1220 = vsel %vm1176, %v1163, %v1219
    %v1221 = vsel %vm1178, %v1164, %v1220
    %v1222 = vsel %vm1180, %v1165, %v1221
    %v1223 = vsel %vm1182, %v1166, %v1222
    %v1224 = vsel %vm1184, %v1167, %v1223
    %v1225 = vsel %vm1172, %v1169, %v1168
    %v1226 = vsel %vm1174, %v1170, %v1225
    %v1227 = vsel %vm1176, %v1171, %v1226
    %v1228 = vsel %vm1178, %v1206, %v1227
    %v1229 = vpack.c.b16 %v1217, %v1213
    %v1230 = vpack.c.b16 %v1228, %v1224
    %1231 = vrot.lane.b32.xlu0 %v1229, 32
    %v1232 = vpop.permute.xlu0 %1231
    %1233 = vrot.lane.b32.xlu0 %v1230, 32
    %v1234 = vpop.permute.xlu0 %1233
    %v1237 = vunpack.c.l.b16 %v1104
    %v1238 = vunpack.c.l.b16 %v1119
    %v1239 = vsel %vm1172, %v1149, %v1148
    %v1240 = vsel %vm1174, %v1150, %v1239
    %v1241 = vsel %vm1176, %v1151, %v1240
    %v1242 = vsel %vm1178, %v1152, %v1241
    %v1243 = vsel %vm1180, %v1153, %v1242
    %v1244 = vsel %vm1182, %v1154, %v1243
    %v1245 = vsel %vm1184, %v1155, %v1244
    %v1246 = vsel %vm1172, %v1157, %v1156
    %v1247 = vsel %vm1174, %v1158, %v1246
    %v1248 = vsel %vm1176, %v1205, %v1247
    %v1249 = vsel %vm1178, %v1237, %v1248
    %v1250 = vsel %vm1172, %v1162, %v1161
    %v1251 = vsel %vm1174, %v1163, %v1250
    %v1252 = vsel %vm1176, %v1164, %v1251
    %v1253 = vsel %vm1178, %v1165, %v1252
    %v1254 = vsel %vm1180, %v1166, %v1253
    %v1255 = vsel %vm1182, %v1167, %v1254
    %v1256 = vsel %vm1184, %v1168, %v1255
    %v1257 = vsel %vm1172, %v1170, %v1169
    %v1258 = vsel %vm1174, %v1171, %v1257
    %v1259 = vsel %vm1176, %v1206, %v1258
    %v1260 = vsel %vm1178, %v1238, %v1259
    %v1261 = vpack.c.b16 %v1249, %v1245
    %v1262 = vpack.c.b16 %v1260, %v1256
    %1263 = vrot.lane.b32.xlu0 %v1261, 64
    %v1264 = vpop.permute.xlu0 %1263
    %1265 = vrot.lane.b32.xlu0 %v1262, 64
    %v1266 = vpop.permute.xlu0 %1265
    %v1269 = vsel %vm131, %v1201, %v1232
    %v1272 = vsel %vm131, %v1202, %v1234
    %vm1273 = vcmask 523264
    %v1275 = vsel %vm1273, %v1269, %v1264
    %v1277 = vsel %vm1273, %v1272, %v1266
    %v1280 = vcombine.high %v1275, %v1275
    %v1282 = vunpack.c.l.s4 1966171168
    %v1283 = vunpack.c.0.s8 %v1282
    %v1284 = vlaneseq
    %v1285 = vshrl.u32 %v1284, 7
    %v1286 = vsub.s32 %v1283, %v1285
    %v1287 = vrot.slane %v1275, %v1286
    %v1289 = vunpack.c.l.s4 1966171168
    %v1290 = vunpack.c.0.s8 %v1289
    %v1291 = vlaneseq
    %v1292 = vshrl.u32 %v1291, 7
    %v1293 = vsub.s32 %v1290, %v1292
    %v1294 = vrot.slane %v1280, %v1293
    %v1295 = vcombine.high %v1287, %v1287
    %v1296 = vcombine.high %v1294, %v1294
    %v1298 = vunpack.c.l.s4 1966171168
    %v1299 = vunpack.c.0.s8 %v1298
    %v1300 = vlaneseq
    %v1301 = vshrl.u32 %v1300, 7
    %v1302 = vsub.s32 %v1299, %v1301
    %v1303 = vrot.slane %v1287, %v1302
    %v1305 = vunpack.c.l.s4 1966171168
    %v1306 = vunpack.c.0.s8 %v1305
    %v1307 = vlaneseq
    %v1308 = vshrl.u32 %v1307, 7
    %v1309 = vsub.s32 %v1306, %v1308
    %v1310 = vrot.slane %v1294, %v1309
    %v1312 = vunpack.c.l.s4 1966171168
    %v1313 = vunpack.c.0.s8 %v1312
    %v1314 = vlaneseq
    %v1315 = vshrl.u32 %v1314, 7
    %v1316 = vsub.s32 %v1313, %v1315
    %v1317 = vrot.slane %v1295, %v1316
    %v1319 = vunpack.c.l.s4 1966171168
    %v1320 = vunpack.c.0.s8 %v1319
    %v1321 = vlaneseq
    %v1322 = vshrl.u32 %v1321, 7
    %v1323 = vsub.s32 %v1320, %v1322
    %v1324 = vrot.slane %v1296, %v1323
    %v1325 = vcombine.high %v1303, %v1303
    %v1326 = vcombine.high %v1310, %v1310
    %v1327 = vcombine.high %v1317, %v1317
    %v1328 = vcombine.high %v1277, %v1277
    %v1330 = vunpack.c.l.s4 1966171168
    %v1331 = vunpack.c.0.s8 %v1330
    %v1332 = vlaneseq
    %v1333 = vshrl.u32 %v1332, 7
    %v1334 = vsub.s32 %v1331, %v1333
    %v1335 = vrot.slane %v1277, %v1334
    %v1337 = vunpack.c.l.s4 1966171168
    %v1338 = vunpack.c.0.s8 %v1337
    %v1339 = vlaneseq
    %v1340 = vshrl.u32 %v1339, 7
    %v1341 = vsub.s32 %v1338, %v1340
    %v1342 = vrot.slane %v1328, %v1341
    %v1343 = vcombine.high %v1335, %v1335
    %v1344 = vcombine.high %v1342, %v1342
    %v1346 = vunpack.c.l.s4 1966171168
    %v1347 = vunpack.c.0.s8 %v1346
    %v1348 = vlaneseq
    %v1349 = vshrl.u32 %v1348, 7
    %v1350 = vsub.s32 %v1347, %v1349
    %v1351 = vrot.slane %v1335, %v1350
    %v1353 = vunpack.c.l.s4 1966171168
    %v1354 = vunpack.c.0.s8 %v1353
    %v1355 = vlaneseq
    %v1356 = vshrl.u32 %v1355, 7
    %v1357 = vsub.s32 %v1354, %v1356
    %v1358 = vrot.slane %v1342, %v1357
    %v1360 = vunpack.c.l.s4 1966171168
    %v1361 = vunpack.c.0.s8 %v1360
    %v1362 = vlaneseq
    %v1363 = vshrl.u32 %v1362, 7
    %v1364 = vsub.s32 %v1361, %v1363
    %v1365 = vrot.slane %v1343, %v1364
    %v1367 = vunpack.c.l.s4 1966171168
    %v1368 = vunpack.c.0.s8 %v1367
    %v1369 = vlaneseq
    %v1370 = vshrl.u32 %v1369, 7
    %v1371 = vsub.s32 %v1368, %v1370
    %v1372 = vrot.slane %v1344, %v1371
    %v1373 = vcombine.high %v1351, %v1351
    %v1374 = vcombine.high %v1358, %v1358
    %v1375 = vcombine.high %v1365, %v1365
    %v1376 = vunpack.i.l.s16 %v1303
    %v1377 = vunpack.i.h.s16 %v1303
    %v1378 = vunpack.i.l.s16 %v1317
    %v1379 = vunpack.i.h.s16 %v1317
    %v1380 = vunpack.i.l.s16 %v1325
    %v1381 = vunpack.i.h.s16 %v1325
    %v1382 = vunpack.i.l.s16 %v1327
    %v1383 = vunpack.i.h.s16 %v1327
    %v1384 = vunpack.i.l.s16 %v1310
    %v1385 = vunpack.i.h.s16 %v1310
    %v1386 = vunpack.i.l.s16 %v1324
    %v1387 = vunpack.i.h.s16 %v1324
    %v1388 = vunpack.i.l.s16 %v1326
    %v1389 = vunpack.i.l.s16 %v1351
    %v1390 = vunpack.i.h.s16 %v1351
    %v1391 = vunpack.i.l.s16 %v1365
    %v1392 = vunpack.i.h.s16 %v1365
    %v1393 = vunpack.i.l.s16 %v1373
    %v1394 = vunpack.i.h.s16 %v1373
    %v1395 = vunpack.i.l.s16 %v1375
    %v1396 = vunpack.i.h.s16 %v1375
    %v1397 = vunpack.i.l.s16 %v1358
    %v1398 = vunpack.i.h.s16 %v1358
    %v1399 = vunpack.i.l.s16 %v1372
    %v1400 = vunpack.i.h.s16 %v1372
    %v1401 = vunpack.i.l.s16 %v1374
    %v1402 = vld [vmem:[%s2] sm:$0xf]
    %v1403 = vld [vmem:[%s2 + $0x4] sm:$0xf]
    %v1404 = vld [vmem:[%s2 + $0x8] sm:$0xf]
    %v1405 = vld [vmem:[%s2 + $0xc] sm:$0xf]
    %v1406 = vld [vmem:[%s2 + $0x10] sm:$0xf]
    %v1407 = vld [vmem:[%s2 + $0x14] sm:$0xf]
    %v1408 = vld [vmem:[%s2 + $0x18] sm:$0xf]
    %v1409 = vld [vmem:[%s2 + $0x1c] sm:$0xf]
    %v1410 = vld [vmem:[%s2 + $0x20] sm:$0xf]
    %v1411 = vld [vmem:[%s2 + $0x24] sm:$0xf]
    %v1412 = vld [vmem:[%s2 + $0x28] sm:$0xf]
    %v1413 = vld [vmem:[%s2 + $0x2c] sm:$0xf]
    %v1414 = vpack.i.b16 %v1377, %v1376
    %v1415 = vpack.i.b16 %v1379, %v1378
    %v1416 = vpack.i.b16 %v1381, %v1380
    %v1417 = vpack.i.b16 %v1383, %v1382
    %v1418 = vpack.i.b16 %v1385, %v1384
    %v1419 = vpack.i.b16 %v1387, %v1386
    %v1420 = vpack.i.b16 %v1389, %v1388
    %v1421 = vpack.i.b16 %v1391, %v1390
    %v1422 = vpack.i.b16 %v1393, %v1392
    %v1423 = vpack.i.b16 %v1395, %v1394
    %v1424 = vpack.i.b16 %v1397, %v1396
    %v1425 = vpack.i.b16 %v1399, %v1398
    %v1426 = vpack.i.b16 %v1401, %v1400
    %v1427 = vcombine.low %v1414, %v1415
    %v1428 = vcombine.low %v1416, %v1417
    %v1429 = vcombine.low %v1418, %v1419
    %v1430 = vcombine.low %v1420, %v1421
    %v1432 = vunpack.c.l.s4 1966171168
    %v1433 = vunpack.c.0.s8 %v1432
    %v1434 = vlaneseq
    %v1435 = vshrl.u32 %v1434, 7
    %v1436 = vsub.s32 %v1433, %v1435
    %v1437 = vrot.slane %v1427, %v1436
    %v1439 = vunpack.c.l.s4 1966171168
    %v1440 = vunpack.c.0.s8 %v1439
    %v1441 = vlaneseq
    %v1442 = vshrl.u32 %v1441, 7
    %v1443 = vsub.s32 %v1440, %v1442
    %v1444 = vrot.slane %v1428, %v1443
    %v1446 = vunpack.c.l.s4 1966171168
    %v1447 = vunpack.c.0.s8 %v1446
    %v1448 = vlaneseq
    %v1449 = vshrl.u32 %v1448, 7
    %v1450 = vsub.s32 %v1447, %v1449
    %v1451 = vrot.slane %v1429, %v1450
    %v1453 = vunpack.c.l.s4 1966171168
    %v1454 = vunpack.c.0.s8 %v1453
    %v1455 = vlaneseq
    %v1456 = vshrl.u32 %v1455, 7
    %v1457 = vsub.s32 %v1454, %v1456
    %v1458 = vrot.slane %v1430, %v1457
    %v1459 = vcombine.low %v1437, %v1444
    %v1460 = vcombine.low %v1451, %v1458
    %v1462 = vunpack.c.l.s4 1966171168
    %v1463 = vunpack.c.0.s8 %v1462
    %v1464 = vlaneseq
    %v1465 = vshrl.u32 %v1464, 7
    %v1466 = vsub.s32 %v1463, %v1465
    %v1467 = vrot.slane %v1459, %v1466
    %v1469 = vunpack.c.l.s4 1966171168
    %v1470 = vunpack.c.0.s8 %v1469
    %v1471 = vlaneseq
    %v1472 = vshrl.u32 %v1471, 7
    %v1473 = vsub.s32 %v1470, %v1472
    %v1474 = vrot.slane %v1460, %v1473
    %v1475 = vcombine.low %v1467, %v1474
    %v1476 = vcombine.low %v1422, %v1423
    %v1477 = vcombine.low %v1424, %v1425
    %v1479 = vunpack.c.l.s4 1966171168
    %v1480 = vunpack.c.0.s8 %v1479
    %v1481 = vlaneseq
    %v1482 = vshrl.u32 %v1481, 7
    %v1483 = vsub.s32 %v1480, %v1482
    %v1484 = vrot.slane %v1476, %v1483
    %v1486 = vunpack.c.l.s4 1966171168
    %v1487 = vunpack.c.0.s8 %v1486
    %v1488 = vlaneseq
    %v1489 = vshrl.u32 %v1488, 7
    %v1490 = vsub.s32 %v1487, %v1489
    %v1491 = vrot.slane %v1477, %v1490
    %v1493 = vunpack.c.l.s4 1966171168
    %v1494 = vunpack.c.0.s8 %v1493
    %v1495 = vlaneseq
    %v1496 = vshrl.u32 %v1495, 7
    %v1497 = vsub.s32 %v1494, %v1496
    %v1498 = vrot.slane %v1426, %v1497
    %v1499 = vcombine.low %v1484, %v1491
    %v1501 = vunpack.c.l.s4 1966171168
    %v1502 = vunpack.c.0.s8 %v1501
    %v1503 = vlaneseq
    %v1504 = vshrl.u32 %v1503, 7
    %v1505 = vsub.s32 %v1502, %v1504
    %v1506 = vrot.slane %v1499, %v1505
    %v1508 = vunpack.c.l.s4 1966171168
    %v1509 = vunpack.c.0.s8 %v1508
    %v1510 = vlaneseq
    %v1511 = vshrl.u32 %v1510, 7
    %v1512 = vsub.s32 %v1509, %v1511
    %v1513 = vrot.slane %v1498, %v1512
    %v1514 = vcombine.low %v1506, %v1513
    %v1527 = vunpack.c.l.b16 %v1402
    %v1528 = vunpack.c.l.b16 %v1403
    %v1529 = vunpack.c.l.b16 %v1404
    %v1530 = vunpack.c.l.b16 %v1405
    %v1531 = vunpack.c.l.b16 %v1406
    %v1532 = vunpack.c.l.b16 %v1407
    %v1533 = vunpack.c.l.b16 %v1408
    %v1534 = vunpack.c.l.b16 %v1409
    %v1535 = vunpack.c.l.b16 %v1410
    %v1536 = vunpack.c.l.b16 %v1411
    %v1537 = vunpack.c.l.b16 %v1412
    %v1538 = vunpack.c.l.b16 %v1413
    %v1539 = vpack.c.b16 %v1528, %v1527
    %v1540 = vpack.c.b16 %v1530, %v1529
    %v1541 = vpack.c.b16 %v1532, %v1531
    %v1542 = vpack.c.b16 %v1534, %v1533
    %v1543 = vpack.c.b16 %v1536, %v1535
    %v1544 = vpack.c.b16 %v1538, %v1537
    %vm1551 = vcmask 785408
    %v1553 = vsel %vm1551, %v1475, 0
    %v1556 = vsel %vm1551, %v1514, 0
    %1558 = vmatprep.subr.bf16.mxu0 0
    %1559 = vmatpush1.bf16.msra.mxu0 %v1539
    %1560 = vmatprep.subr.bf16.mxu0 0
    %1561 = vmatpush1.bf16.msra.mxu0 %v1540
    %1562 = vmatprep.subr.bf16.mxu0 0
    %1563 = vmatpush1.bf16.msra.mxu0 %v1541
    %1564 = vmatprep.subr.bf16.mxu0 0
    %1565 = vmatpush1.bf16.msra.mxu0 %v1542
    %1566 = vmatprep.subr.bf16.mxu0 0
    %1567 = vmatpush1.bf16.msra.mxu0 %v1543
    %1568 = vmatprep.subr.bf16.mxu0 0
    %1569 = vmatpush1.bf16.msra.mxu0 %v1544
    %1570 = vmatprep.subr.bf16.mxu0 0
    %1571 = vmatpush1.bf16.msra.mxu0 0
    %1572 = vmatprep.subr.bf16.mxu0 0
    %1573 = vmatpush1.bf16.msra.mxu0 0
    %1574 = vmatprep.subr.bf16.mxu0 0
    %1575 = vmatpush1.bf16.msra.mxu0 0
    %1576 = vmatprep.subr.bf16.mxu0 0
    %1577 = vmatpush1.bf16.msra.mxu0 0
    %1578 = vmatprep.subr.bf16.mxu0 0
    %1579 = vmatpush1.bf16.msra.mxu0 0
    %1580 = vmatprep.subr.bf16.mxu0 0
    %1581 = vmatpush1.bf16.msra.mxu0 0
    %1582 = vmatprep.subr.bf16.mxu0 0
    %1583 = vmatpush1.bf16.msra.mxu0 0
    %1584 = vmatprep.subr.bf16.mxu0 0
    %1585 = vmatpush1.bf16.msra.mxu0 0
    %1586 = vmatprep.subr.bf16.mxu0 0
    %1587 = vmatpush1.bf16.msra.mxu0 0
    %1588 = vmatprep.subr.bf16.mxu0 0
    %1589 = vmatpush1.bf16.msra.mxu0 0
    %1590 = vmatprep.mubr.bf16.mxu0 0
    %1591 = vmatmul.mubr.bf16.gmra.mrb[0].mxu0 %v1553
    %v1592 = vpop.f32.mrb[0].mxu0
    %v1593 = vadd.f32 0.0, %v1592
    %v1594 = vpop.f32.mrb[0].mxu0
    %v1595 = vpop.f32.mrb[0].mxu0
    %v1596 = vadd.f32 0.0, %v1595
    %v1597 = vpop.f32.mrb[0].mxu0
    %1598 = vmatprep.mubr.bf16.mxu0 0
    %1599 = vmatmul.mubr.bf16.gmra.mrb[0].mxu0 %v1556
    %v1600 = vpop.f32.mrb[0].mxu0
    %v1601 = vadd.f32 0.0, %v1600
    %v1602 = vpop.f32.mrb[0].mxu0
    %v1603 = vpop.f32.mrb[0].mxu0
    %v1604 = vadd.f32 0.0, %v1603
    %v1605 = vpop.f32.mrb[0].mxu0
    %1606 = vdwg.mxu0
    %v1611 = vcombine.high %v1593, %v1593
    %v1613 = vunpack.c.l.s4 1966171168
    %v1614 = vunpack.c.0.s8 %v1613
    %v1615 = vlaneseq
    %v1616 = vshrl.u32 %v1615, 7
    %v1617 = vsub.s32 %v1614, %v1616
    %v1618 = vrot.slane %v1593, %v1617
    %v1620 = vunpack.c.l.s4 1966171168
    %v1621 = vunpack.c.0.s8 %v1620
    %v1622 = vlaneseq
    %v1623 = vshrl.u32 %v1622, 7
    %v1624 = vsub.s32 %v1621, %v1623
    %v1625 = vrot.slane %v1611, %v1624
    %v1626 = vcombine.high %v1618, %v1618
    %v1627 = vcombine.high %v1625, %v1625
    %v1629 = vunpack.c.l.s4 1966171168
    %v1630 = vunpack.c.0.s8 %v1629
    %v1631 = vlaneseq
    %v1632 = vshrl.u32 %v1631, 7
    %v1633 = vsub.s32 %v1630, %v1632
    %v1634 = vrot.slane %v1618, %v1633
    %v1636 = vunpack.c.l.s4 1966171168
    %v1637 = vunpack.c.0.s8 %v1636
    %v1638 = vlaneseq
    %v1639 = vshrl.u32 %v1638, 7
    %v1640 = vsub.s32 %v1637, %v1639
    %v1641 = vrot.slane %v1625, %v1640
    %v1643 = vunpack.c.l.s4 1966171168
    %v1644 = vunpack.c.0.s8 %v1643
    %v1645 = vlaneseq
    %v1646 = vshrl.u32 %v1645, 7
    %v1647 = vsub.s32 %v1644, %v1646
    %v1648 = vrot.slane %v1626, %v1647
    %v1650 = vunpack.c.l.s4 1966171168
    %v1651 = vunpack.c.0.s8 %v1650
    %v1652 = vlaneseq
    %v1653 = vshrl.u32 %v1652, 7
    %v1654 = vsub.s32 %v1651, %v1653
    %v1655 = vrot.slane %v1627, %v1654
    %v1656 = vcombine.high %v1634, %v1634
    %v1657 = vcombine.high %v1641, %v1641
    %v1658 = vcombine.high %v1648, %v1648
    %v1659 = vcombine.high %v1655, %v1655
    %v1660 = vcombine.high %v1596, %v1596
    %v1662 = vunpack.c.l.s4 1966171168
    %v1663 = vunpack.c.0.s8 %v1662
    %v1664 = vlaneseq
    %v1665 = vshrl.u32 %v1664, 7
    %v1666 = vsub.s32 %v1663, %v1665
    %v1667 = vrot.slane %v1596, %v1666
    %v1669 = vunpack.c.l.s4 1966171168
    %v1670 = vunpack.c.0.s8 %v1669
    %v1671 = vlaneseq
    %v1672 = vshrl.u32 %v1671, 7
    %v1673 = vsub.s32 %v1670, %v1672
    %v1674 = vrot.slane %v1660, %v1673
    %v1675 = vcombine.high %v1667, %v1667
    %v1676 = vcombine.high %v1674, %v1674
    %v1678 = vunpack.c.l.s4 1966171168
    %v1679 = vunpack.c.0.s8 %v1678
    %v1680 = vlaneseq
    %v1681 = vshrl.u32 %v1680, 7
    %v1682 = vsub.s32 %v1679, %v1681
    %v1683 = vrot.slane %v1667, %v1682
    %v1685 = vunpack.c.l.s4 1966171168
    %v1686 = vunpack.c.0.s8 %v1685
    %v1687 = vlaneseq
    %v1688 = vshrl.u32 %v1687, 7
    %v1689 = vsub.s32 %v1686, %v1688
    %v1690 = vrot.slane %v1674, %v1689
    %v1692 = vunpack.c.l.s4 1966171168
    %v1693 = vunpack.c.0.s8 %v1692
    %v1694 = vlaneseq
    %v1695 = vshrl.u32 %v1694, 7
    %v1696 = vsub.s32 %v1693, %v1695
    %v1697 = vrot.slane %v1675, %v1696
    %v1699 = vunpack.c.l.s4 1966171168
    %v1700 = vunpack.c.0.s8 %v1699
    %v1701 = vlaneseq
    %v1702 = vshrl.u32 %v1701, 7
    %v1703 = vsub.s32 %v1700, %v1702
    %v1704 = vrot.slane %v1676, %v1703
    %v1705 = vcombine.high %v1683, %v1683
    %v1706 = vcombine.high %v1690, %v1690
    %v1707 = vcombine.high %v1697, %v1697
    %v1708 = vcombine.high %v1704, %v1704
    %v1709 = vcombine.high %v1601, %v1601
    %v1711 = vunpack.c.l.s4 1966171168
    %v1712 = vunpack.c.0.s8 %v1711
    %v1713 = vlaneseq
    %v1714 = vshrl.u32 %v1713, 7
    %v1715 = vsub.s32 %v1712, %v1714
    %v1716 = vrot.slane %v1601, %v1715
    %v1718 = vunpack.c.l.s4 1966171168
    %v1719 = vunpack.c.0.s8 %v1718
    %v1720 = vlaneseq
    %v1721 = vshrl.u32 %v1720, 7
    %v1722 = vsub.s32 %v1719, %v1721
    %v1723 = vrot.slane %v1709, %v1722
    %v1724 = vcombine.high %v1716, %v1716
    %v1725 = vcombine.high %v1723, %v1723
    %v1727 = vunpack.c.l.s4 1966171168
    %v1728 = vunpack.c.0.s8 %v1727
    %v1729 = vlaneseq
    %v1730 = vshrl.u32 %v1729, 7
    %v1731 = vsub.s32 %v1728, %v1730
    %v1732 = vrot.slane %v1716, %v1731
    %v1734 = vunpack.c.l.s4 1966171168
    %v1735 = vunpack.c.0.s8 %v1734
    %v1736 = vlaneseq
    %v1737 = vshrl.u32 %v1736, 7
    %v1738 = vsub.s32 %v1735, %v1737
    %v1739 = vrot.slane %v1723, %v1738
    %v1741 = vunpack.c.l.s4 1966171168
    %v1742 = vunpack.c.0.s8 %v1741
    %v1743 = vlaneseq
    %v1744 = vshrl.u32 %v1743, 7
    %v1745 = vsub.s32 %v1742, %v1744
    %v1746 = vrot.slane %v1724, %v1745
    %v1748 = vunpack.c.l.s4 1966171168
    %v1749 = vunpack.c.0.s8 %v1748
    %v1750 = vlaneseq
    %v1751 = vshrl.u32 %v1750, 7
    %v1752 = vsub.s32 %v1749, %v1751
    %v1753 = vrot.slane %v1725, %v1752
    %v1754 = vcombine.high %v1732, %v1732
    %v1755 = vcombine.high %v1739, %v1739
    %v1756 = vcombine.high %v1746, %v1746
    %v1757 = vcombine.high %v1753, %v1753
    %v1759 = vunpack.c.l.s4 1966171168
    %v1760 = vunpack.c.0.s8 %v1759
    %v1761 = vlaneseq
    %v1762 = vshrl.u32 %v1761, 7
    %v1763 = vsub.s32 %v1760, %v1762
    %v1764 = vrot.slane %v1604, %v1763
    %v1765 = vcombine.high %v1764, %v1764
    %v1767 = vunpack.c.l.s4 1966171168
    %v1768 = vunpack.c.0.s8 %v1767
    %v1769 = vlaneseq
    %v1770 = vshrl.u32 %v1769, 7
    %v1771 = vsub.s32 %v1768, %v1770
    %v1772 = vrot.slane %v1764, %v1771
    %v1774 = vunpack.c.l.s4 1966171168
    %v1775 = vunpack.c.0.s8 %v1774
    %v1776 = vlaneseq
    %v1777 = vshrl.u32 %v1776, 7
    %v1778 = vsub.s32 %v1775, %v1777
    %v1779 = vrot.slane %v1765, %v1778
    %v1806 = vld [vmem:[%s4] sm:$0x1]
    %v1808 = vlaneseq
    %v1809 = vshrl.u32 %v1808, 7
    %v1810 = vsub.s32 0, %v1809
    %v1811 = vrot.slane %v1806, %v1810
    %v1812 = vcombine.high %v1811, %v1811
    %v1814 = vunpack.c.l.s4 1966171168
    %v1815 = vunpack.c.0.s8 %v1814
    %v1816 = vlaneseq
    %v1817 = vshrl.u32 %v1816, 7
    %v1818 = vsub.s32 %v1815, %v1817
    %v1819 = vrot.slane %v1811, %v1818
    %v1821 = vunpack.c.l.s4 1966171168
    %v1822 = vunpack.c.0.s8 %v1821
    %v1823 = vlaneseq
    %v1824 = vshrl.u32 %v1823, 7
    %v1825 = vsub.s32 %v1822, %v1824
    %v1826 = vrot.slane %v1812, %v1825
    %v1827 = vcombine.high %v1819, %v1819
    %v1828 = vcombine.high %v1826, %v1826
    %v1830 = vunpack.c.l.s4 1966171168
    %v1831 = vunpack.c.0.s8 %v1830
    %v1832 = vlaneseq
    %v1833 = vshrl.u32 %v1832, 7
    %v1834 = vsub.s32 %v1831, %v1833
    %v1835 = vrot.slane %v1819, %v1834
    %v1837 = vunpack.c.l.s4 1966171168
    %v1838 = vunpack.c.0.s8 %v1837
    %v1839 = vlaneseq
    %v1840 = vshrl.u32 %v1839, 7
    %v1841 = vsub.s32 %v1838, %v1840
    %v1842 = vrot.slane %v1826, %v1841
    %v1844 = vunpack.c.l.s4 1966171168
    %v1845 = vunpack.c.0.s8 %v1844
    %v1846 = vlaneseq
    %v1847 = vshrl.u32 %v1846, 7
    %v1848 = vsub.s32 %v1845, %v1847
    %v1849 = vrot.slane %v1827, %v1848
    %v1851 = vunpack.c.l.s4 1966171168
    %v1852 = vunpack.c.0.s8 %v1851
    %v1853 = vlaneseq
    %v1854 = vshrl.u32 %v1853, 7
    %v1855 = vsub.s32 %v1852, %v1854
    %v1856 = vrot.slane %v1828, %v1855
    %v1857 = vcombine.high %v1835, %v1835
    %v1858 = vcombine.high %v1842, %v1842
    %v1859 = vcombine.high %v1849, %v1849
    %v1860 = vcombine.high %v1856, %v1856
    %v1869 = vadd.f32 %v1634, %v1835
    %v1870 = vadd.f32 %v1648, %v1849
    %v1871 = vadd.f32 %v1656, %v1857
    %v1872 = vadd.f32 %v1658, %v1859
    %v1873 = vadd.f32 %v1641, %v1842
    %v1874 = vadd.f32 %v1655, %v1856
    %v1875 = vadd.f32 %v1657, %v1858
    %v1876 = vadd.f32 %v1659, %v1860
    %v1877 = vadd.f32 %v1683, %v1835
    %v1878 = vadd.f32 %v1697, %v1849
    %v1879 = vadd.f32 %v1705, %v1857
    %v1880 = vadd.f32 %v1707, %v1859
    %v1881 = vadd.f32 %v1690, %v1842
    %v1882 = vadd.f32 %v1704, %v1835
    %v1883 = vadd.f32 %v1706, %v1849
    %v1884 = vadd.f32 %v1708, %v1857
    %v1885 = vadd.f32 %v1732, %v1859
    %v1886 = vadd.f32 %v1746, %v1842
    %v1887 = vadd.f32 %v1754, %v1856
    %v1888 = vadd.f32 %v1756, %v1858
    %v1889 = vadd.f32 %v1739, %v1860
    %v1890 = vadd.f32 %v1753, %v1835
    %v1891 = vadd.f32 %v1755, %v1849
    %v1892 = vadd.f32 %v1757, %v1857
    %v1893 = vadd.f32 %v1772, %v1859
    %v1894 = vadd.f32 %v1779, %v1842
    %v1895 = vmax.f32 %v1869, 0.0
    %v1896 = vmax.f32 %v1870, 0.0
    %v1897 = vmax.f32 %v1871, 0.0
    %v1898 = vmax.f32 %v1872, 0.0
    %v1899 = vmax.f32 %v1873, 0.0
    %v1900 = vmax.f32 %v1874, 0.0
    %v1901 = vmax.f32 %v1875, 0.0
    %v1902 = vmax.f32 %v1876, 0.0
    %v1903 = vmax.f32 %v1877, 0.0
    %v1904 = vmax.f32 %v1878, 0.0
    %v1905 = vmax.f32 %v1879, 0.0
    %v1906 = vmax.f32 %v1880, 0.0
    %v1907 = vmax.f32 %v1881, 0.0
    %v1908 = vmax.f32 %v1882, 0.0
    %v1909 = vmax.f32 %v1883, 0.0
    %v1910 = vmax.f32 %v1884, 0.0
    %v1911 = vmax.f32 %v1885, 0.0
    %v1912 = vmax.f32 %v1886, 0.0
    %v1913 = vmax.f32 %v1887, 0.0
    %v1914 = vmax.f32 %v1888, 0.0
    %v1915 = vmax.f32 %v1889, 0.0
    %v1916 = vmax.f32 %v1890, 0.0
    %v1917 = vmax.f32 %v1891, 0.0
    %v1918 = vmax.f32 %v1892, 0.0
    %v1919 = vmax.f32 %v1893, 0.0
    %v1920 = vmax.f32 %v1894, 0.0
    %v1947 = vcombine.low %v1895, %v1896
    %v1948 = vcombine.low %v1897, %v1898
    %v1949 = vcombine.low %v1899, %v1900
    %v1950 = vcombine.low %v1901, %v1902
    %v1952 = vunpack.c.l.s4 1966171168
    %v1953 = vunpack.c.0.s8 %v1952
    %v1954 = vlaneseq
    %v1955 = vshrl.u32 %v1954, 7
    %v1956 = vsub.s32 %v1953, %v1955
    %v1957 = vrot.slane %v1947, %v1956
    %v1959 = vunpack.c.l.s4 1966171168
    %v1960 = vunpack.c.0.s8 %v1959
    %v1961 = vlaneseq
    %v1962 = vshrl.u32 %v1961, 7
    %v1963 = vsub.s32 %v1960, %v1962
    %v1964 = vrot.slane %v1948, %v1963
    %v1966 = vunpack.c.l.s4 1966171168
    %v1967 = vunpack.c.0.s8 %v1966
    %v1968 = vlaneseq
    %v1969 = vshrl.u32 %v1968, 7
    %v1970 = vsub.s32 %v1967, %v1969
    %v1971 = vrot.slane %v1949, %v1970
    %v1973 = vunpack.c.l.s4 1966171168
    %v1974 = vunpack.c.0.s8 %v1973
    %v1975 = vlaneseq
    %v1976 = vshrl.u32 %v1975, 7
    %v1977 = vsub.s32 %v1974, %v1976
    %v1978 = vrot.slane %v1950, %v1977
    %v1979 = vcombine.low %v1957, %v1964
    %v1980 = vcombine.low %v1971, %v1978
    %v1982 = vunpack.c.l.s4 1966171168
    %v1983 = vunpack.c.0.s8 %v1982
    %v1984 = vlaneseq
    %v1985 = vshrl.u32 %v1984, 7
    %v1986 = vsub.s32 %v1983, %v1985
    %v1987 = vrot.slane %v1979, %v1986
    %v1989 = vunpack.c.l.s4 1966171168
    %v1990 = vunpack.c.0.s8 %v1989
    %v1991 = vlaneseq
    %v1992 = vshrl.u32 %v1991, 7
    %v1993 = vsub.s32 %v1990, %v1992
    %v1994 = vrot.slane %v1980, %v1993
    %v1995 = vcombine.low %v1987, %v1994
    %v1996 = vcombine.low %v1903, %v1904
    %v1997 = vcombine.low %v1905, %v1906
    %v1999 = vunpack.c.l.s4 1966171168
    %v2000 = vunpack.c.0.s8 %v1999
    %v2001 = vlaneseq
    %v2002 = vshrl.u32 %v2001, 7
    %v2003 = vsub.s32 %v2000, %v2002
    %v2004 = vrot.slane %v1996, %v2003
    %v2006 = vunpack.c.l.s4 1966171168
    %v2007 = vunpack.c.0.s8 %v2006
    %v2008 = vlaneseq
    %v2009 = vshrl.u32 %v2008, 7
    %v2010 = vsub.s32 %v2007, %v2009
    %v2011 = vrot.slane %v1997, %v2010
    %v2013 = vunpack.c.l.s4 1966171168
    %v2014 = vunpack.c.0.s8 %v2013
    %v2015 = vlaneseq
    %v2016 = vshrl.u32 %v2015, 7
    %v2017 = vsub.s32 %v2014, %v2016
    %v2018 = vrot.slane %v1907, %v2017
    %v2019 = vcombine.low %v2004, %v2011
    %v2021 = vunpack.c.l.s4 1966171168
    %v2022 = vunpack.c.0.s8 %v2021
    %v2023 = vlaneseq
    %v2024 = vshrl.u32 %v2023, 7
    %v2025 = vsub.s32 %v2022, %v2024
    %v2026 = vrot.slane %v2019, %v2025
    %v2028 = vunpack.c.l.s4 1966171168
    %v2029 = vunpack.c.0.s8 %v2028
    %v2030 = vlaneseq
    %v2031 = vshrl.u32 %v2030, 7
    %v2032 = vsub.s32 %v2029, %v2031
    %v2033 = vrot.slane %v2018, %v2032
    %v2034 = vcombine.low %v2026, %v2033
    %v2035 = vcombine.low %v1908, %v1909
    %v2036 = vcombine.low %v1910, %v1911
    %v2037 = vcombine.low %v1912, %v1913
    %v2038 = vcombine.low %v1914, %v1915
    %v2040 = vunpack.c.l.s4 1966171168
    %v2041 = vunpack.c.0.s8 %v2040
    %v2042 = vlaneseq
    %v2043 = vshrl.u32 %v2042, 7
    %v2044 = vsub.s32 %v2041, %v2043
    %v2045 = vrot.slane %v2035, %v2044
    %v2047 = vunpack.c.l.s4 1966171168
    %v2048 = vunpack.c.0.s8 %v2047
    %v2049 = vlaneseq
    %v2050 = vshrl.u32 %v2049, 7
    %v2051 = vsub.s32 %v2048, %v2050
    %v2052 = vrot.slane %v2036, %v2051
    %v2054 = vunpack.c.l.s4 1966171168
    %v2055 = vunpack.c.0.s8 %v2054
    %v2056 = vlaneseq
    %v2057 = vshrl.u32 %v2056, 7
    %v2058 = vsub.s32 %v2055, %v2057
    %v2059 = vrot.slane %v2037, %v2058
    %v2061 = vunpack.c.l.s4 1966171168
    %v2062 = vunpack.c.0.s8 %v2061
    %v2063 = vlaneseq
    %v2064 = vshrl.u32 %v2063, 7
    %v2065 = vsub.s32 %v2062, %v2064
    %v2066 = vrot.slane %v2038, %v2065
    %v2067 = vcombine.low %v2045, %v2052
    %v2068 = vcombine.low %v2059, %v2066
    %v2070 = vunpack.c.l.s4 1966171168
    %v2071 = vunpack.c.0.s8 %v2070
    %v2072 = vlaneseq
    %v2073 = vshrl.u32 %v2072, 7
    %v2074 = vsub.s32 %v2071, %v2073
    %v2075 = vrot.slane %v2067, %v2074
    %v2077 = vunpack.c.l.s4 1966171168
    %v2078 = vunpack.c.0.s8 %v2077
    %v2079 = vlaneseq
    %v2080 = vshrl.u32 %v2079, 7
    %v2081 = vsub.s32 %v2078, %v2080
    %v2082 = vrot.slane %v2068, %v2081
    %v2083 = vcombine.low %v2075, %v2082
    %v2084 = vcombine.low %v1916, %v1917
    %v2085 = vcombine.low %v1918, %v1919
    %v2087 = vunpack.c.l.s4 1966171168
    %v2088 = vunpack.c.0.s8 %v2087
    %v2089 = vlaneseq
    %v2090 = vshrl.u32 %v2089, 7
    %v2091 = vsub.s32 %v2088, %v2090
    %v2092 = vrot.slane %v2084, %v2091
    %v2094 = vunpack.c.l.s4 1966171168
    %v2095 = vunpack.c.0.s8 %v2094
    %v2096 = vlaneseq
    %v2097 = vshrl.u32 %v2096, 7
    %v2098 = vsub.s32 %v2095, %v2097
    %v2099 = vrot.slane %v2085, %v2098
    %v2101 = vunpack.c.l.s4 1966171168
    %v2102 = vunpack.c.0.s8 %v2101
    %v2103 = vlaneseq
    %v2104 = vshrl.u32 %v2103, 7
    %v2105 = vsub.s32 %v2102, %v2104
    %v2106 = vrot.slane %v1920, %v2105
    %v2107 = vcombine.low %v2092, %v2099
    %v2109 = vunpack.c.l.s4 1966171168
    %v2110 = vunpack.c.0.s8 %v2109
    %v2111 = vlaneseq
    %v2112 = vshrl.u32 %v2111, 7
    %v2113 = vsub.s32 %v2110, %v2112
    %v2114 = vrot.slane %v2107, %v2113
    %v2116 = vunpack.c.l.s4 1966171168
    %v2117 = vunpack.c.0.s8 %v2116
    %v2118 = vlaneseq
    %v2119 = vshrl.u32 %v2118, 7
    %v2120 = vsub.s32 %v2117, %v2119
    %v2121 = vrot.slane %v2106, %v2120
    %v2122 = vcombine.low %v2114, %v2121
    %v2127 = vpack.c.bf16 %v2034, %v1995
    %v2128 = vpack.c.bf16 %v2122, %v2083
    %v2129 = vcombine.high %v2127, 0
    %v2131 = vunpack.c.l.s4 1983009808
    %v2132 = vunpack.c.0.s8 %v2131
    %v2133 = vlaneseq
    %v2134 = vshrl.u32 %v2133, 7
    %v2135 = vsub.s32 %v2132, %v2134
    %v2136 = vrot.slane %v2127, %v2135
    %v2138 = vunpack.c.l.s4 1983009808
    %v2139 = vunpack.c.0.s8 %v2138
    %v2140 = vlaneseq
    %v2141 = vshrl.u32 %v2140, 7
    %v2142 = vsub.s32 %v2139, %v2141
    %v2143 = vrot.slane %v2129, %v2142
    %v2144 = vcombine.high %v2136, 0
    %v2146 = vunpack.c.l.s4 1934713408
    %v2147 = vunpack.c.0.s8 %v2146
    %v2148 = vlaneseq
    %v2149 = vshrl.u32 %v2148, 7
    %v2150 = vsub.s32 %v2147, %v2149
    %v2151 = vrot.slane %v2136, %v2150
    %v2153 = vunpack.c.l.s4 1934713408
    %v2154 = vunpack.c.0.s8 %v2153
    %v2155 = vlaneseq
    %v2156 = vshrl.u32 %v2155, 7
    %v2157 = vsub.s32 %v2154, %v2156
    %v2158 = vrot.slane %v2144, %v2157
    %v2160 = vunpack.c.l.s4 1934713408
    %v2161 = vunpack.c.0.s8 %v2160
    %v2162 = vlaneseq
    %v2163 = vshrl.u32 %v2162, 7
    %v2164 = vsub.s32 %v2161, %v2163
    %v2165 = vrot.slane %v2143, %v2164
    %v2166 = vcombine.high %v2151, 0
    %v2167 = vcombine.high %v2158, 0
    %v2168 = vcombine.high %v2165, 0
    %v2169 = vcombine.high %v2143, 0
    %v2170 = vcombine.high %v2128, 0
    %v2172 = vunpack.c.l.s4 1983009808
    %v2173 = vunpack.c.0.s8 %v2172
    %v2174 = vlaneseq
    %v2175 = vshrl.u32 %v2174, 7
    %v2176 = vsub.s32 %v2173, %v2175
    %v2177 = vrot.slane %v2128, %v2176
    %v2179 = vunpack.c.l.s4 1983009808
    %v2180 = vunpack.c.0.s8 %v2179
    %v2181 = vlaneseq
    %v2182 = vshrl.u32 %v2181, 7
    %v2183 = vsub.s32 %v2180, %v2182
    %v2184 = vrot.slane %v2170, %v2183
    %v2185 = vcombine.high %v2177, 0
    %v2187 = vunpack.c.l.s4 1934713408
    %v2188 = vunpack.c.0.s8 %v2187
    %v2189 = vlaneseq
    %v2190 = vshrl.u32 %v2189, 7
    %v2191 = vsub.s32 %v2188, %v2190
    %v2192 = vrot.slane %v2177, %v2191
    %v2194 = vunpack.c.l.s4 1934713408
    %v2195 = vunpack.c.0.s8 %v2194
    %v2196 = vlaneseq
    %v2197 = vshrl.u32 %v2196, 7
    %v2198 = vsub.s32 %v2195, %v2197
    %v2199 = vrot.slane %v2185, %v2198
    %v2201 = vunpack.c.l.s4 1934713408
    %v2202 = vunpack.c.0.s8 %v2201
    %v2203 = vlaneseq
    %v2204 = vshrl.u32 %v2203, 7
    %v2205 = vsub.s32 %v2202, %v2204
    %v2206 = vrot.slane %v2184, %v2205
    %v2207 = vcombine.high %v2192, 0
    %v2208 = vcombine.high %v2199, 0
    %v2209 = vcombine.high %v2206, 0
    %v2210 = vcombine.high %v2184, 0
    %v2213 = vpack.i.b16 %v2192, %v2151
    %v2214 = vshrl.u32 %v2151, 16
    %v2215 = vshrl.u32 %v2192, 16
    %v2216 = vpack.i.b16 %v2215, %v2214
    %v2219 = vpack.i.b16 %v2207, %v2166
    %v2220 = vshrl.u32 %v2166, 16
    %v2221 = vshrl.u32 %v2207, 16
    %v2222 = vpack.i.b16 %v2221, %v2220
    %v2225 = vpack.i.b16 %v2199, %v2158
    %v2226 = vshrl.u32 %v2158, 16
    %v2227 = vshrl.u32 %v2199, 16
    %v2228 = vpack.i.b16 %v2227, %v2226
    %v2231 = vpack.i.b16 %v2208, %v2167
    %v2232 = vshrl.u32 %v2167, 16
    %v2233 = vshrl.u32 %v2208, 16
    %v2234 = vpack.i.b16 %v2233, %v2232
    %v2237 = vpack.i.b16 %v2206, %v2165
    %v2238 = vshrl.u32 %v2165, 16
    %v2239 = vshrl.u32 %v2206, 16
    %v2240 = vpack.i.b16 %v2239, %v2238
    %v2243 = vpack.i.b16 %v2209, %v2168
    %v2244 = vshrl.u32 %v2168, 16
    %v2245 = vshrl.u32 %v2209, 16
    %v2246 = vpack.i.b16 %v2245, %v2244
    %v2249 = vpack.i.b16 %v2210, %v2169
    %2250 = vrot.lane.b32.xlu0 %v2216, 32
    %v2251 = vpop.permute.xlu0 %2250
    %2252 = vrot.lane.b32.xlu0 %v2219, 64
    %v2253 = vpop.permute.xlu0 %2252
    %2254 = vrot.lane.b32.xlu0 %v2222, 96
    %v2255 = vpop.permute.xlu0 %2254
    %2256 = vrot.lane.b32.xlu0 %v2228, 32
    %v2257 = vpop.permute.xlu0 %2256
    %2258 = vrot.lane.b32.xlu0 %v2231, 64
    %v2259 = vpop.permute.xlu0 %2258
    %2260 = vrot.lane.b32.xlu0 %v2234, 96
    %v2261 = vpop.permute.xlu0 %2260
    %2262 = vrot.lane.b32.xlu0 %v2240, 32
    %v2263 = vpop.permute.xlu0 %2262
    %2264 = vrot.lane.b32.xlu0 %v2243, 64
    %v2265 = vpop.permute.xlu0 %2264
    %2266 = vrot.lane.b32.xlu0 %v2246, 96
    %v2267 = vpop.permute.xlu0 %2266
    %v2270 = vsel %vm131, %v2213, %v2251
    %v2272 = vsel %vm1273, %v2270, %v2253
    %v2274 = vsel %vm1551, %v2272, %v2255
    %v2278 = vsel %vm131, %v2225, %v2257
    %v2280 = vsel %vm1273, %v2278, %v2259
    %v2282 = vsel %vm1551, %v2280, %v2261
    %v2286 = vsel %vm131, %v2237, %v2263
    %v2288 = vsel %vm1273, %v2286, %v2265
    %v2290 = vsel %vm1551, %v2288, %v2267
    %v2292 = vld [vmem:[%s5] sm:$0xf]
    %v2293 = vld [vmem:[%s5 + $0x4] sm:$0xf]
    %v2294 = vld [vmem:[%s5 + $0x8] sm:$0xf]
    %v2295 = vld [vmem:[%s5 + $0xc] sm:$0xf]
    %v2296 = vld [vmem:[%s5 + $0x10] sm:$0xf]
    %v2297 = vld [vmem:[%s5 + $0x14] sm:$0xf]
    %v2298 = vld [vmem:[%s5 + $0x18] sm:$0xf]
    %v2299 = vld [vmem:[%s5 + $0x1c] sm:$0xf]
    %v2300 = vld [vmem:[%s5 + $0x20] sm:$0xf]
    %v2301 = vld [vmem:[%s5 + $0x24] sm:$0xf]
    %v2302 = vld [vmem:[%s5 + $0x28] sm:$0xf]
    %v2303 = vld [vmem:[%s5 + $0x2c] sm:$0xf]
    %v2304 = vld [vmem:[%s5 + $0x30] sm:$0xf]
    %v2305 = vld [vmem:[%s5 + $0x34] sm:$0xf]
    %v2306 = vld [vmem:[%s5 + $0x38] sm:$0xf]
    %v2307 = vld [vmem:[%s5 + $0x3c] sm:$0xf]
    %v2308 = vld [vmem:[%s5 + $0x40] sm:$0xf]
    %v2309 = vld [vmem:[%s5 + $0x44] sm:$0xf]
    %v2310 = vld [vmem:[%s5 + $0x48] sm:$0xf]
    %v2311 = vld [vmem:[%s5 + $0x4c] sm:$0xf]
    %v2312 = vld [vmem:[%s5 + $0x50] sm:$0xf]
    %v2313 = vld [vmem:[%s5 + $0x54] sm:$0xf]
    %v2314 = vld [vmem:[%s5 + $0x58] sm:$0xf]
    %v2315 = vld [vmem:[%s5 + $0x5c] sm:$0xf]
    %v2316 = vld [vmem:[%s5 + $0x60] sm:$0xf]
    %v2317 = vld [vmem:[%s5 + $0x64] sm:$0xf]
    %v2318 = vld [vmem:[%s5 + $0x68] sm:$0xf]
    %v2319 = vld [vmem:[%s5 + $0x6c] sm:$0xf]
    %v2320 = vld [vmem:[%s5 + $0x70] sm:$0xf]
    %v2321 = vld [vmem:[%s5 + $0x74] sm:$0xf]
    %v2322 = vld [vmem:[%s5 + $0x78] sm:$0xf]
    %v2323 = vld [vmem:[%s5 + $0x7c] sm:$0xf]
    %v2324 = vld [vmem:[%s5 + $0x80] sm:$0xf]
    %v2325 = vld [vmem:[%s5 + $0x84] sm:$0xf]
    %v2326 = vld [vmem:[%s5 + $0x88] sm:$0xf]
    %v2327 = vld [vmem:[%s5 + $0x8c] sm:$0xf]
    %v2328 = vld [vmem:[%s5 + $0x90] sm:$0xf]
    %v2329 = vld [vmem:[%s5 + $0x94] sm:$0xf]
    %v2330 = vld [vmem:[%s5 + $0x98] sm:$0xf]
    %v2331 = vld [vmem:[%s5 + $0x9c] sm:$0xf]
    %v2332 = vld [vmem:[%s5 + $0xa0] sm:$0xf]
    %v2333 = vld [vmem:[%s5 + $0xa4] sm:$0xf]
    %v2334 = vld [vmem:[%s5 + $0xa8] sm:$0xf]
    %v2335 = vld [vmem:[%s5 + $0xac] sm:$0xf]
    %v2336 = vld [vmem:[%s5 + $0xb0] sm:$0xf]
    %v2337 = vld [vmem:[%s5 + $0xb4] sm:$0xf]
    %v2338 = vld [vmem:[%s5 + $0xb8] sm:$0xf]
    %v2339 = vld [vmem:[%s5 + $0xbc] sm:$0xf]
    %v2340 = vld [vmem:[%s5 + $0xc0] sm:$0xf]
    %v2341 = vld [vmem:[%s5 + $0xc4] sm:$0xf]
    %v2342 = vld [vmem:[%s5 + $0xc8] sm:$0xf]
    %v2343 = vld [vmem:[%s5 + $0xcc] sm:$0xf]
    %v2344 = vld [vmem:[%s8] sm:$0x1]
    %v2346 = vlaneseq
    %v2347 = vshrl.u32 %v2346, 7
    %v2348 = vsub.s32 0, %v2347
    %v2349 = vrot.slane %v2344, %v2348
    %v2403 = vunpack.c.l.b16 %v2292
    %v2404 = vunpack.c.l.b16 %v2293
    %v2405 = vunpack.c.l.b16 %v2294
    %v2406 = vunpack.c.l.b16 %v2295
    %v2407 = vunpack.c.l.b16 %v2296
    %v2408 = vunpack.c.l.b16 %v2297
    %v2409 = vunpack.c.l.b16 %v2298
    %v2410 = vunpack.c.l.b16 %v2299
    %v2411 = vunpack.c.l.b16 %v2300
    %v2412 = vunpack.c.l.b16 %v2301
    %v2413 = vunpack.c.l.b16 %v2302
    %v2414 = vunpack.c.l.b16 %v2303
    %v2415 = vunpack.c.l.b16 %v2304
    %v2416 = vunpack.c.l.b16 %v2305
    %v2417 = vunpack.c.l.b16 %v2306
    %v2418 = vunpack.c.l.b16 %v2307
    %v2419 = vunpack.c.l.b16 %v2308
    %v2420 = vunpack.c.l.b16 %v2309
    %v2421 = vunpack.c.l.b16 %v2310
    %v2422 = vunpack.c.l.b16 %v2311
    %v2423 = vunpack.c.l.b16 %v2312
    %v2424 = vunpack.c.l.b16 %v2313
    %v2425 = vunpack.c.l.b16 %v2314
    %v2426 = vunpack.c.l.b16 %v2315
    %v2427 = vunpack.c.l.b16 %v2316
    %v2428 = vunpack.c.l.b16 %v2317
    %v2429 = vunpack.c.l.b16 %v2318
    %v2430 = vunpack.c.l.b16 %v2319
    %v2431 = vunpack.c.l.b16 %v2320
    %v2432 = vunpack.c.l.b16 %v2321
    %v2433 = vunpack.c.l.b16 %v2322
    %v2434 = vunpack.c.l.b16 %v2323
    %v2435 = vunpack.c.l.b16 %v2324
    %v2436 = vunpack.c.l.b16 %v2325
    %v2437 = vunpack.c.l.b16 %v2326
    %v2438 = vunpack.c.l.b16 %v2327
    %v2439 = vunpack.c.l.b16 %v2328
    %v2440 = vunpack.c.l.b16 %v2329
    %v2441 = vunpack.c.l.b16 %v2330
    %v2442 = vunpack.c.l.b16 %v2331
    %v2443 = vunpack.c.l.b16 %v2332
    %v2444 = vunpack.c.l.b16 %v2333
    %v2445 = vunpack.c.l.b16 %v2334
    %v2446 = vunpack.c.l.b16 %v2335
    %v2447 = vunpack.c.l.b16 %v2336
    %v2448 = vunpack.c.l.b16 %v2337
    %v2449 = vunpack.c.l.b16 %v2338
    %v2450 = vunpack.c.l.b16 %v2339
    %v2451 = vunpack.c.l.b16 %v2340
    %v2452 = vunpack.c.l.b16 %v2341
    %v2453 = vunpack.c.l.b16 %v2342
    %v2454 = vunpack.c.l.b16 %v2343
    %v2455 = vpack.c.b16 %v2404, %v2403
    %v2456 = vpack.c.b16 %v2406, %v2405
    %v2457 = vpack.c.b16 %v2408, %v2407
    %v2458 = vpack.c.b16 %v2410, %v2409
    %v2459 = vpack.c.b16 %v2412, %v2411
    %v2460 = vpack.c.b16 %v2414, %v2413
    %v2461 = vpack.c.b16 %v2416, %v2415
    %v2462 = vpack.c.b16 %v2418, %v2417
    %v2463 = vpack.c.b16 %v2420, %v2419
    %v2464 = vpack.c.b16 %v2422, %v2421
    %v2465 = vpack.c.b16 %v2424, %v2423
    %v2466 = vpack.c.b16 %v2426, %v2425
    %v2467 = vpack.c.b16 %v2428, %v2427
    %v2468 = vpack.c.b16 %v2430, %v2429
    %v2469 = vpack.c.b16 %v2432, %v2431
    %v2470 = vpack.c.b16 %v2434, %v2433
    %v2471 = vpack.c.b16 %v2436, %v2435
    %v2472 = vpack.c.b16 %v2438, %v2437
    %v2473 = vpack.c.b16 %v2440, %v2439
    %v2474 = vpack.c.b16 %v2442, %v2441
    %v2475 = vpack.c.b16 %v2444, %v2443
    %v2476 = vpack.c.b16 %v2446, %v2445
    %v2477 = vpack.c.b16 %v2448, %v2447
    %v2478 = vpack.c.b16 %v2450, %v2449
    %v2479 = vpack.c.b16 %v2452, %v2451
    %v2480 = vpack.c.b16 %v2454, %v2453
    %v2508 = vsel %vm131, %v2249, 0
    %2510 = vmatprep.subr.bf16.mxu0 0
    %2511 = vmatpush1.bf16.msra.mxu0 %v2455
    %2512 = vmatprep.subr.bf16.mxu0 0
    %2513 = vmatpush1.bf16.msra.mxu0 %v2456
    %2514 = vmatprep.subr.bf16.mxu0 0
    %2515 = vmatpush1.bf16.msra.mxu0 %v2457
    %2516 = vmatprep.subr.bf16.mxu0 0
    %2517 = vmatpush1.bf16.msra.mxu0 %v2458
    %2518 = vmatprep.subr.bf16.mxu0 0
    %2519 = vmatpush1.bf16.msra.mxu0 %v2459
    %2520 = vmatprep.subr.bf16.mxu0 0
    %2521 = vmatpush1.bf16.msra.mxu0 %v2460
    %2522 = vmatprep.subr.bf16.mxu0 0
    %2523 = vmatpush1.bf16.msra.mxu0 %v2461
    %2524 = vmatprep.subr.bf16.mxu0 0
    %2525 = vmatpush1.bf16.msra.mxu0 %v2462
    %2526 = vmatprep.subr.bf16.mxu0 0
    %2527 = vmatpush1.bf16.msra.mxu0 %v2463
    %2528 = vmatprep.subr.bf16.mxu0 0
    %2529 = vmatpush1.bf16.msra.mxu0 %v2464
    %2530 = vmatprep.subr.bf16.mxu0 0
    %2531 = vmatpush1.bf16.msra.mxu0 %v2465
    %2532 = vmatprep.subr.bf16.mxu0 0
    %2533 = vmatpush1.bf16.msra.mxu0 %v2466
    %2534 = vmatprep.subr.bf16.mxu0 0
    %2535 = vmatpush1.bf16.msra.mxu0 %v2467
    %2536 = vmatprep.subr.bf16.mxu0 0
    %2537 = vmatpush1.bf16.msra.mxu0 %v2468
    %2538 = vmatprep.subr.bf16.mxu0 0
    %2539 = vmatpush1.bf16.msra.mxu0 %v2469
    %2540 = vmatprep.subr.bf16.mxu0 0
    %2541 = vmatpush1.bf16.msra.mxu0 %v2470
    %2542 = vmatprep.mubr.bf16.mxu0 %v2282
    %2543 = vmatmul.mubr.bf16.gmra.mrb[0].mxu0 %v2274
    %v2544 = vpop.f32.mrb[0].mxu0
    %v2545 = vadd.f32 %v2349, %v2544
    %v2546 = vpop.f32.mrb[0].mxu0
    %v2547 = vpop.f32.mrb[0].mxu0
    %v2548 = vpop.f32.mrb[0].mxu0
    %2549 = vdwg.mxu0
    %2550 = vmatprep.subr.bf16.mxu0 0
    %2551 = vmatpush1.bf16.msra.mxu0 %v2471
    %2552 = vmatprep.subr.bf16.mxu0 0
    %2553 = vmatpush1.bf16.msra.mxu0 %v2472
    %2554 = vmatprep.subr.bf16.mxu0 0
    %2555 = vmatpush1.bf16.msra.mxu0 %v2473
    %2556 = vmatprep.subr.bf16.mxu0 0
    %2557 = vmatpush1.bf16.msra.mxu0 %v2474
    %2558 = vmatprep.subr.bf16.mxu0 0
    %2559 = vmatpush1.bf16.msra.mxu0 %v2475
    %2560 = vmatprep.subr.bf16.mxu0 0
    %2561 = vmatpush1.bf16.msra.mxu0 %v2476
    %2562 = vmatprep.subr.bf16.mxu0 0
    %2563 = vmatpush1.bf16.msra.mxu0 %v2477
    %2564 = vmatprep.subr.bf16.mxu0 0
    %2565 = vmatpush1.bf16.msra.mxu0 %v2478
    %2566 = vmatprep.subr.bf16.mxu0 0
    %2567 = vmatpush1.bf16.msra.mxu0 %v2479
    %2568 = vmatprep.subr.bf16.mxu0 0
    %2569 = vmatpush1.bf16.msra.mxu0 %v2480
    %2570 = vmatprep.subr.bf16.mxu0 0
    %2571 = vmatpush1.bf16.msra.mxu0 0
    %2572 = vmatprep.subr.bf16.mxu0 0
    %2573 = vmatpush1.bf16.msra.mxu0 0
    %2574 = vmatprep.subr.bf16.mxu0 0
    %2575 = vmatpush1.bf16.msra.mxu0 0
    %2576 = vmatprep.subr.bf16.mxu0 0
    %2577 = vmatpush1.bf16.msra.mxu0 0
    %2578 = vmatprep.subr.bf16.mxu0 0
    %2579 = vmatpush1.bf16.msra.mxu0 0
    %2580 = vmatprep.subr.bf16.mxu0 0
    %2581 = vmatpush1.bf16.msra.mxu0 0
    %2582 = vmatprep.mubr.bf16.mxu0 %v2508
    %2583 = vmatmul.mubr.bf16.gmra.mrb[0].mxu0 %v2290
    %v2584 = vpop.f32.mrb[0].mxu0
    %v2585 = vadd.f32 %v2545, %v2584
    %v2586 = vpop.f32.mrb[0].mxu0
    %v2587 = vpop.f32.mrb[0].mxu0
    %v2588 = vpop.f32.mrb[0].mxu0
    %2589 = vdwg.mxu0
    %v2590 = vmax.f32 %v2585, 0.0
    %v2591 = vpack.c.bf16 %v2590, %v2590
    %v2592 = vld [vmem:[%s6] sm:$0xf]
    %v2593 = vld [vmem:[%s6 + $0x4] sm:$0xf]
    %v2594 = vld [vmem:[%s6 + $0x8] sm:$0xf]
    %v2595 = vld [vmem:[%s6 + $0xc] sm:$0xf]
    %v2596 = vld [vmem:[%s6 + $0x10] sm:$0xf]
    %v2597 = vld [vmem:[%s6 + $0x14] sm:$0xf]
    %v2598 = vld [vmem:[%s6 + $0x18] sm:$0xf]
    %v2599 = vld [vmem:[%s6 + $0x1c] sm:$0xf]
    %v2600 = vld [vmem:[%s9] sm:$0x1]
    %v2602 = vlaneseq
    %v2603 = vshrl.u32 %v2602, 7
    %v2604 = vsub.s32 0, %v2603
    %v2605 = vrot.slane %v2600, %v2604
    %v2615 = vunpack.c.l.b16 %v2592
    %v2616 = vunpack.c.l.b16 %v2593
    %v2617 = vunpack.c.l.b16 %v2594
    %v2618 = vunpack.c.l.b16 %v2595
    %v2619 = vunpack.c.l.b16 %v2596
    %v2620 = vunpack.c.l.b16 %v2597
    %v2621 = vunpack.c.l.b16 %v2598
    %v2622 = vunpack.c.l.b16 %v2599
    %v2623 = vpack.c.b16 %v2616, %v2615
    %v2624 = vpack.c.b16 %v2618, %v2617
    %v2625 = vpack.c.b16 %v2620, %v2619
    %v2626 = vpack.c.b16 %v2622, %v2621
    %v2632 = vsel %vm1273, %v2591, 0
    %2634 = vmatprep.subr.bf16.mxu0 0
    %2635 = vmatpush1.bf16.msra.mxu0 %v2623
    %2636 = vmatprep.subr.bf16.mxu0 0
    %2637 = vmatpush1.bf16.msra.mxu0 %v2624
    %2638 = vmatprep.subr.bf16.mxu0 0
    %2639 = vmatpush1.bf16.msra.mxu0 %v2625
    %2640 = vmatprep.subr.bf16.mxu0 0
    %2641 = vmatpush1.bf16.msra.mxu0 %v2626
    %2642 = vmatprep.subr.bf16.mxu0 0
    %2643 = vmatpush1.bf16.msra.mxu0 0
    %2644 = vmatprep.subr.bf16.mxu0 0
    %2645 = vmatpush1.bf16.msra.mxu0 0
    %2646 = vmatprep.subr.bf16.mxu0 0
    %2647 = vmatpush1.bf16.msra.mxu0 0
    %2648 = vmatprep.subr.bf16.mxu0 0
    %2649 = vmatpush1.bf16.msra.mxu0 0
    %2650 = vmatprep.subr.bf16.mxu0 0
    %2651 = vmatpush1.bf16.msra.mxu0 0
    %2652 = vmatprep.subr.bf16.mxu0 0
    %2653 = vmatpush1.bf16.msra.mxu0 0
    %2654 = vmatprep.subr.bf16.mxu0 0
    %2655 = vmatpush1.bf16.msra.mxu0 0
    %2656 = vmatprep.subr.bf16.mxu0 0
    %2657 = vmatpush1.bf16.msra.mxu0 0
    %2658 = vmatprep.subr.bf16.mxu0 0
    %2659 = vmatpush1.bf16.msra.mxu0 0
    %2660 = vmatprep.subr.bf16.mxu0 0
    %2661 = vmatpush1.bf16.msra.mxu0 0
    %2662 = vmatprep.subr.bf16.mxu0 0
    %2663 = vmatpush1.bf16.msra.mxu0 0
    %2664 = vmatprep.subr.bf16.mxu0 0
    %2665 = vmatpush1.bf16.msra.mxu0 0
    %2666 = vmatprep.mubr.bf16.mxu0 0
    %2667 = vmatmul.mubr.bf16.gmra.mrb[0].mxu0 %v2632
    %v2668 = vpop.f32.mrb[0].mxu0
    %v2669 = vadd.f32 %v2605, %v2668
    %v2670 = vpop.f32.mrb[0].mxu0
    %v2671 = vpop.f32.mrb[0].mxu0
    %v2672 = vpop.f32.mrb[0].mxu0
    %2673 = vdwg.mxu0
    %v2674 = vmax.f32 %v2669, 0.0
    %v2675 = vpack.c.bf16 %v2674, %v2674
    %v2676 = vld [vmem:[%s7] sm:$0xf]
    %v2677 = vld [vmem:[%s7 + $0x4] sm:$0xf]
    %v2678 = vld [vmem:[%s7 + $0x8] sm:$0xf]
    %v2679 = vld [vmem:[%s7 + $0xc] sm:$0xf]
    %v2680 = vld [vmem:[%s7 + $0x10] sm:$0xf]
    %v2681 = vld [vmem:[%s7 + $0x14] sm:$0xf]
    %v2682 = vld [vmem:[%s7 + $0x18] sm:$0xf]
    %v2683 = vld [vmem:[%s7 + $0x1c] sm:$0xf]
    %v2684 = vld [vmem:[%s10] sm:$0x1]
    %v2686 = vlaneseq
    %v2687 = vshrl.u32 %v2686, 7
    %v2688 = vsub.s32 0, %v2687
    %v2689 = vrot.slane %v2684, %v2688
    %v2699 = vunpack.c.l.b16 %v2676
    %v2700 = vunpack.c.l.b16 %v2677
    %v2701 = vunpack.c.l.b16 %v2678
    %v2702 = vunpack.c.l.b16 %v2679
    %v2703 = vunpack.c.l.b16 %v2680
    %v2704 = vunpack.c.l.b16 %v2681
    %v2705 = vunpack.c.l.b16 %v2682
    %v2706 = vunpack.c.l.b16 %v2683
    %v2707 = vpack.c.b16 %v2700, %v2699
    %v2708 = vpack.c.b16 %v2702, %v2701
    %v2709 = vpack.c.b16 %v2704, %v2703
    %v2710 = vpack.c.b16 %v2706, %v2705
    %v2716 = vsel %vm1273, %v2675, 0
    %2718 = vmatprep.subr.bf16.mxu0 0
    %2719 = vmatpush1.bf16.msra.mxu0 %v2707
    %2720 = vmatprep.subr.bf16.mxu0 0
    %2721 = vmatpush1.bf16.msra.mxu0 %v2708
    %2722 = vmatprep.subr.bf16.mxu0 0
    %2723 = vmatpush1.bf16.msra.mxu0 %v2709
    %2724 = vmatprep.subr.bf16.mxu0 0
    %2725 = vmatpush1.bf16.msra.mxu0 %v2710
    %2726 = vmatprep.subr.bf16.mxu0 0
    %2727 = vmatpush1.bf16.msra.mxu0 0
    %2728 = vmatprep.subr.bf16.mxu0 0
    %2729 = vmatpush1.bf16.msra.mxu0 0
    %2730 = vmatprep.subr.bf16.mxu0 0
    %2731 = vmatpush1.bf16.msra.mxu0 0
    %2732 = vmatprep.subr.bf16.mxu0 0
    %2733 = vmatpush1.bf16.msra.mxu0 0
    %2734 = vmatprep.subr.bf16.mxu0 0
    %2735 = vmatpush1.bf16.msra.mxu0 0
    %2736 = vmatprep.subr.bf16.mxu0 0
    %2737 = vmatpush1.bf16.msra.mxu0 0
    %2738 = vmatprep.subr.bf16.mxu0 0
    %2739 = vmatpush1.bf16.msra.mxu0 0
    %2740 = vmatprep.subr.bf16.mxu0 0
    %2741 = vmatpush1.bf16.msra.mxu0 0
    %2742 = vmatprep.subr.bf16.mxu0 0
    %2743 = vmatpush1.bf16.msra.mxu0 0
    %2744 = vmatprep.subr.bf16.mxu0 0
    %2745 = vmatpush1.bf16.msra.mxu0 0
    %2746 = vmatprep.subr.bf16.mxu0 0
    %2747 = vmatpush1.bf16.msra.mxu0 0
    %2748 = vmatprep.subr.bf16.mxu0 0
    %2749 = vmatpush1.bf16.msra.mxu0 0
    %2750 = vmatprep.mubr.bf16.mxu0 0
    %2751 = vmatmul.mubr.bf16.gmra.mrb[0].mxu0 %v2716
    %v2752 = vpop.f32.mrb[0].mxu0
    %v2753 = vadd.f32 %v2689, %v2752
    %v2754 = vpop.f32.mrb[0].mxu0
    %v2755 = vpop.f32.mrb[0].mxu0
    %v2756 = vpop.f32.mrb[0].mxu0
    %2757 = vdwg.mxu0
    %vm2758 = vcmask 25600
    %2759 = vst.msk [vmem:[#allocation2] sm:$0x3] %vm2758, %v2753
    // Predicated region
    $region46: #{tpu_custom_call.1} parent=1 // pred_check
      _
    $region47: #{tpu_custom_call.1} parent=1 // pred_check_branch
      %2761 = sbr.rel (0) target = $region49
    $region48: #{tpu_custom_call.1} parent=1 // pred_region
      %s2763 = ssub.s32 32, 32
      %2764 = vsyncadd [#allocation3], %s2763
      %s2766 = sshll.u32 [#allocation2], 4
      %s2767 = int_to_ptr.vmem [resolvable:$true] %s2766
      %2769 = dma.vmem_to_hbm [thread:$0]  %s2767, 32, %s11, [#allocation3]
    $region49: #{tpu_custom_call.1} parent=1 // pred_fallthru
      _
    // Predicated region
    $region50: #{tpu_custom_call.1} parent=1 // pred_check
      _
    $region51: #{tpu_custom_call.1} parent=1 // pred_check_branch
      %2771 = sbr.rel (0) target = $region53
    $region52: #{tpu_custom_call.1} parent=1 // pred_region
      %2772 = dma.done [#allocation3], 32
    $region53: #{tpu_custom_call.1} parent=1 // pred_fallthru
      _
    %2773 = vsyncpa [#allocation3], 1

</llo_original>
